<compile_context>
chip_gen: v5e
topology: v5e:2x2
jax: 0.10.0
libtpu: 0.0.40
codegen_flags: <defaults>
</compile_context>

<pallas_src>
import functools

import numpy as np
import jax
import jax.numpy as jnp
from jax.experimental import pallas as pl
from jax.experimental.pallas import tpu as pltpu


# ----------------------------------------------------------------------------
# Batch-independent 0/1 gather ("im2col") matrix, built host-side (numpy).
#   G[ih*w + iw, t*oh*ow + r*ow + c] = 1  where (ih, iw) feeds tap t = dy*k+dx
#   of output pixel (r, c).  Out-of-bounds taps stay 0 (== zero padding).
#   Shape (h*w, k*k*oh*ow): independent of batch size.
# ----------------------------------------------------------------------------
@functools.lru_cache(maxsize=None)
def _gather_matrix(h, w, k, stride, pad, oh, ow):
    g = np.zeros((h * w, k * k * oh * ow), np.float32)
    for dy in range(k):
        for dx in range(k):
            t = dy * k + dx
            for r in range(oh):
                ih = r * stride + dy - pad
                if not 0 <= ih < h:
                    continue
                for c in range(ow):
                    iw = c * stride + dx - pad
                    if 0 <= iw < w:
                        g[ih * w + iw, t * oh * ow + r * ow + c] = 1.0
    return g


# ----------------------------------------------------------------------------
# Fused encoder kernel.  Activation layout: channels on sublanes, spatial
# (batch-major) on lanes:  a1 (8, N*196), a2 (16, N*49), a3 (32, N*9),
# h (128, N), heads (2L, N).
# ----------------------------------------------------------------------------
def _encoder_kernel(cols1t_ref, g2_ref, g3_ref,
                    w1_ref, b1_ref,
                    w2_ref, b2_ref, gamma_ref, beta_ref,
                    w3_ref, b3_ref,
                    w1p_ref, bl1_ref,
                    wh_ref, bh_ref,
                    noise_ref,
                    z_ref, kl_ref,
                    *, n, latent):
    f32 = jnp.float32
    bf16 = jnp.bfloat16

    def mm(a, b):
        return jnp.dot(a, b, preferred_element_type=f32)

    def conv_gather(a_t, g_ref, hw_in, ohw):
        # a_t: (cin, n*hw_in).  Returns im2col columns (9*cin, n*ohw).
        g = g_ref[...]                                              # (hw_in, 9*ohw) bf16
        per_batch = []
        for b in range(n):                                          # static unroll (n small)
            a_b = a_t[:, b * hw_in:(b + 1) * hw_in].astype(bf16)    # (cin, hw_in)
            wide = mm(a_b, g)                                       # (cin, 9*ohw) one gather GEMM
            taps = [wide[:, t * ohw:(t + 1) * ohw] for t in range(9)]
            per_batch.append(jnp.concatenate(taps, axis=0))         # (9*cin, ohw)
        return jnp.concatenate(per_batch, axis=1)                   # (9*cin, n*ohw)

    # conv1 (1->8, k3 s2 p1) + ReLU  (im2col done in the wrapper).
    a1 = jnp.maximum(mm(w1_ref[...], cols1t_ref[...]) + b1_ref[...], 0.0)      # (8, n*196)

    # conv2 (8->16, k3 s2 p1): in-kernel im2col (K = 72) + single GEMM.
    cols2 = conv_gather(a1, g2_ref, 196, 49)                                   # (72, n*49)
    pre2 = mm(w2_ref[...], cols2) + b2_ref[...]                                # (16, n*49)

    # BatchNorm2d(16): training-mode biased stats over (N, H, W) per channel, eps=1e-5, ReLU.
    mean = jnp.mean(pre2, axis=1, keepdims=True)                               # (16, 1)
    var = jnp.mean((pre2 - mean) * (pre2 - mean), axis=1, keepdims=True)
    scale = gamma_ref[...] * jax.lax.rsqrt(var + 1e-5)
    shift = beta_ref[...] - mean * scale
    a2 = jnp.maximum(pre2 * scale + shift, 0.0)                                # (16, n*49)

    # conv3 (16->32, k3 s2 p0): im2col (K = 144) + GEMM + ReLU.
    cols3 = conv_gather(a2, g3_ref, 49, 9)                                     # (144, n*9)
    a3 = jnp.maximum(mm(w3_ref[...], cols3) + b3_ref[...], 0.0)                # (32, n*9)

    # flatten (spatial-major rows, weight permuted to match) + linear1 (K = 288) + ReLU.
    cols4 = jnp.concatenate(
        [jnp.concatenate([a3[:, b * 9 + s:b * 9 + s + 1] for s in range(9)], axis=0)
         for b in range(n)], axis=1)                                           # (288, n)
    h = jnp.maximum(mm(w1p_ref[...], cols4) + bl1_ref[...], 0.0)               # (128, n)

    # fused heads [mu ; log_sigma] -> reparameterize -> KL.
    heads = mm(wh_ref[...], h) + bh_ref[...]                                   # (2L, n)
    mu = heads[:latent, :]
    log_sigma = heads[latent:, :]
    sigma = jnp.exp(log_sigma)
    z_ref[...] = mu + sigma * noise_ref[...]
    # log(sigma) == log_sigma (numerically safe form of the reference KL).
    kl_ref[...] = jnp.sum(sigma * sigma + mu * mu - log_sigma - 0.5, keepdims=True)


# ----------------------------------------------------------------------------
# Wrapper: layout / weight repacking + a single pallas_call.
# ----------------------------------------------------------------------------
def conv_encoder_forward(params, x, noise):
    """x: (N, 1, 28, 28) f32; noise: (N, latent) ~ N(0,1).  Returns (z, kl)."""
    n = x.shape[0]
    latent = params["lin2_b"].shape[0]
    f32 = jnp.float32

    # conv1 im2col (wrapper side), transposed layout: (9, N*196), tap order dy*3+dx.
    xp = jnp.pad(x[:, 0].astype(f32), ((0, 0), (1, 1), (1, 1)))                # (N, 30, 30)
    taps = [xp[:, dy:dy + 27:2, dx:dx + 27:2] for dy in range(3) for dx in range(3)]
    cols1t = jnp.stack(taps, axis=0).reshape(9, n * 14 * 14)                   # (9, N*196)

    # Batch-independent gather matrices (0/1 -> exact in bf16).
    g2 = jnp.asarray(_gather_matrix(14, 14, 3, 2, 1, 7, 7), dtype=jnp.bfloat16)  # (196, 441)
    g3 = jnp.asarray(_gather_matrix(7, 7, 3, 2, 0, 3, 3), dtype=jnp.bfloat16)    # (49, 81)

    col = lambda v: v.reshape(-1, 1).astype(f32)

    # Weights repacked for the (Cout, 9*Cin) GEMMs; column order t*Cin + cin, t = dy*3+dx.
    w1 = params["conv1_w"].reshape(8, 9).astype(f32)                           # (8, 9)
    w2 = params["conv2_w"].transpose(0, 2, 3, 1).reshape(16, 72).astype(f32)   # (16, 72)
    w3 = params["conv3_w"].transpose(0, 2, 3, 1).reshape(32, 144).astype(f32)  # (32, 144)
    # linear1 column order s*32 + cin (matches the in-kernel spatial-major flatten).
    w1p = (params["lin1_w"].reshape(128, 32, 9).transpose(0, 2, 1)
           .reshape(128, 288).astype(f32))                                     # (128, 288)
    wh = jnp.concatenate([params["lin2_w"], params["lin3_w"]], axis=0).astype(f32)   # (2L, 128)
    bh = jnp.concatenate([params["lin2_b"], params["lin3_b"]], axis=0).reshape(-1, 1).astype(f32)

    operands = (cols1t, g2, g3,
                w1, col(params["conv1_b"]),
                w2, col(params["conv2_b"]), col(params["bn2_gamma"]), col(params["bn2_beta"]),
                w3, col(params["conv3_b"]),
                w1p, col(params["lin1_b"]),
                wh, bh,
                noise.astype(f32).T)                                           # noise as (L, N)

    flops = int(2 * 8 * 9 * (n * 196)                                  # conv1
                + n * 2 * 8 * 196 * 441 + 2 * 16 * 72 * (n * 49)       # conv2 gather + GEMM
                + n * 2 * 16 * 49 * 81 + 2 * 32 * 144 * (n * 9)        # conv3 gather + GEMM
                + 2 * 128 * 288 * n                                    # linear1
                + 2 * (2 * latent) * 128 * n)                          # fused heads
    transcendentals = int(n * latent + 16)
    bytes_accessed = int(sum(a.size * a.dtype.itemsize for a in operands) + (latent * n + 1) * 4)

    def _full_block(a):
        nd = a.ndim
        return pl.BlockSpec(a.shape, lambda *_, _nd=nd: (0,) * _nd)

    kernel = functools.partial(_encoder_kernel, n=n, latent=latent)
    z_t, kl = pl.pallas_call(
        kernel,
        out_shape=(jax.ShapeDtypeStruct((latent, n), f32),
                   jax.ShapeDtypeStruct((1, 1), f32)),
        in_specs=[_full_block(a) for a in operands],
        out_specs=(pl.BlockSpec((latent, n), lambda: (0, 0)),
                   pl.BlockSpec((1, 1), lambda: (0, 0))),
        compiler_params=pltpu.CompilerParams(vmem_limit_bytes=32 * 1024 * 1024),
        cost_estimate=pl.CostEstimate(flops=flops, transcendentals=transcendentals,
                                      bytes_accessed=bytes_accessed),
    )(*operands)
    return z_t.T, kl[0, 0]


# ----------------------------------------------------------------------------
# Parameters and pure-JAX reference (correctness check).
# ----------------------------------------------------------------------------
def init_params(latent_dims, key):
    ks = jax.random.split(key, 12)
    p = {}
    p["conv1_w"] = 0.1 * jax.random.normal(ks[0], (8, 1, 3, 3), jnp.float32)
    p["conv1_b"] = 0.1 * jax.random.normal(ks[1], (8,), jnp.float32)
    p["conv2_w"] = 0.1 * jax.random.normal(ks[2], (16, 8, 3, 3), jnp.float32)
    p["conv2_b"] = 0.1 * jax.random.normal(ks[3], (16,), jnp.float32)
    p["bn2_gamma"] = jnp.ones((16,), jnp.float32)
    p["bn2_beta"] = jnp.zeros((16,), jnp.float32)
    p["conv3_w"] = 0.1 * jax.random.normal(ks[4], (32, 16, 3, 3), jnp.float32)
    p["conv3_b"] = 0.1 * jax.random.normal(ks[5], (32,), jnp.float32)
    p["lin1_w"] = 0.1 * jax.random.normal(ks[6], (128, 3 * 3 * 32), jnp.float32)
    p["lin1_b"] = 0.1 * jax.random.normal(ks[7], (128,), jnp.float32)
    p["lin2_w"] = 0.1 * jax.random.normal(ks[8], (latent_dims, 128), jnp.float32)
    p["lin2_b"] = 0.1 * jax.random.normal(ks[9], (latent_dims,), jnp.float32)
    p["lin3_w"] = 0.1 * jax.random.normal(ks[10], (latent_dims, 128), jnp.float32)
    p["lin3_b"] = 0.1 * jax.random.normal(ks[11], (latent_dims,), jnp.float32)
    return p


def _reference_forward(params, x, noise):
    """Plain XLA reference mirroring the PyTorch module (no Pallas)."""
    dn = ("NCHW", "OIHW", "NCHW")

    def conv(h, w, b, stride, pad):
        h = jax.lax.conv_general_dilated(h, w, (stride, stride),
                                         [(pad, pad), (pad, pad)],
                                         dimension_numbers=dn)
        return h + b[None, :, None, None]

    h = jax.nn.relu(conv(x, params["conv1_w"], params["conv1_b"], 2, 1))
    h = conv(h, params["conv2_w"], params["conv2_b"], 2, 1)
    mean = h.mean(axis=(0, 2, 3), keepdims=True)
    var = ((h - mean) ** 2).mean(axis=(0, 2, 3), keepdims=True)
    h = (h - mean) / jnp.sqrt(var + 1e-5)
    h = h * params["bn2_gamma"][None, :, None, None] + params["bn2_beta"][None, :, None, None]
    h = jax.nn.relu(h)
    h = jax.nn.relu(conv(h, params["conv3_w"], params["conv3_b"], 2, 0))
    h = h.reshape(h.shape[0], -1)
    h = jax.nn.relu(h @ params["lin1_w"].T + params["lin1_b"])
    mu = h @ params["lin2_w"].T + params["lin2_b"]
    log_sigma = h @ params["lin3_w"].T + params["lin3_b"]
    sigma = jnp.exp(log_sigma)
    z = mu + sigma * noise
    kl = jnp.sum(sigma ** 2 + mu ** 2 - log_sigma - 0.5)
    return z, kl


if __name__ == "__main__":
    latent_dims = 4
    key = jax.random.PRNGKey(0)
    k_param, k_input, k_noise = jax.random.split(key, 3)

    params = init_params(latent_dims, k_param)
    # 28x28 single-channel input (implied by linear1's 3*3*32 input size), batch=2.
    x = jax.random.normal(k_input, (2, 1, 28, 28), jnp.float32)
    noise = jax.random.normal(k_noise, (2, latent_dims), jnp.float32)

    fwd = jax.jit(conv_encoder_forward)
    z, kl = fwd(params, x, noise)
    jax.block_until_ready(z)
    jax.block_until_ready(kl)

    with jax.default_matmul_precision("highest"):
        z_ref, kl_ref = _reference_forward(params, x, noise)

    assert z.shape == (2, latent_dims)
    assert bool(jnp.all(jnp.isfinite(z))) and bool(jnp.isfinite(kl))
    assert bool(jnp.allclose(z, z_ref, rtol=2e-2, atol=3e-2)), (z, z_ref)
    assert bool(jnp.allclose(kl, kl_ref, rtol=5e-2, atol=3e-1)), (kl, kl_ref)
    print("KERNEL_OK")
</pallas_src>

<mosaic_0001>
module attributes {stable_mosaic.version = 11 : i64} {
  func.func @_encoder_kernel(%arg0: memref<9x392xf32, #tpu.memory_space<vmem>>, %arg1: memref<196x441xbf16, #tpu.memory_space<vmem>>, %arg2: memref<49x81xbf16, #tpu.memory_space<vmem>>, %arg3: memref<8x9xf32, #tpu.memory_space<vmem>>, %arg4: memref<8x1xf32, #tpu.memory_space<vmem>>, %arg5: memref<16x72xf32, #tpu.memory_space<vmem>>, %arg6: memref<16x1xf32, #tpu.memory_space<vmem>>, %arg7: memref<16x1xf32, #tpu.memory_space<vmem>>, %arg8: memref<16x1xf32, #tpu.memory_space<vmem>>, %arg9: memref<32x144xf32, #tpu.memory_space<vmem>>, %arg10: memref<32x1xf32, #tpu.memory_space<vmem>>, %arg11: memref<128x288xf32, #tpu.memory_space<vmem>>, %arg12: memref<128x1xf32, #tpu.memory_space<vmem>>, %arg13: memref<8x128xf32, #tpu.memory_space<vmem>>, %arg14: memref<8x1xf32, #tpu.memory_space<vmem>>, %arg15: memref<4x2xf32, #tpu.memory_space<vmem>>, %arg16: memref<4x2xf32, #tpu.memory_space<vmem>>, %arg17: memref<1x1xf32, #tpu.memory_space<vmem>>) attributes {dimension_semantics = [], scalar_prefetch = 0 : i64, scratch_operands = 0 : i64, tpu.core_type = #tpu.core_type<tc>} {
    %c0 = arith.constant 0 : index
    %c0_0 = arith.constant 0 : index
    %0 = vector.load %arg3[%c0, %c0_0] : memref<8x9xf32, #tpu.memory_space<vmem>>, vector<8x9xf32>
    %c0_1 = arith.constant 0 : index
    %c0_2 = arith.constant 0 : index
    %1 = vector.load %arg0[%c0_1, %c0_2] : memref<9x392xf32, #tpu.memory_space<vmem>>, vector<9x392xf32>
    %cst = arith.constant dense<0.000000e+00> : vector<8x392xf32>
    %2 = tpu.matmul %0, %1, %cst {dimension_numbers = #tpu.dot_dimension_numbers<[1], [0], [0], [1], [0, 0, 1, 1], [], []>} : vector<8x9xf32>, vector<9x392xf32>, vector<8x392xf32> -> vector<8x392xf32>
    %c0_3 = arith.constant 0 : index
    %c0_4 = arith.constant 0 : index
    %3 = vector.load %arg4[%c0_3, %c0_4] : memref<8x1xf32, #tpu.memory_space<vmem>>, vector<8x1xf32>
    %4 = vector.broadcast %3 : vector<8x1xf32> to vector<8x392xf32>
    %5 = arith.addf %2, %4 : vector<8x392xf32>
    %cst_5 = arith.constant 0.000000e+00 : f32
    %6 = vector.broadcast %cst_5 : f32 to vector<8x392xf32>
    %7 = arith.maximumf %5, %6 : vector<8x392xf32>
    %c0_6 = arith.constant 0 : index
    %c0_7 = arith.constant 0 : index
    %8 = vector.load %arg1[%c0_6, %c0_7] : memref<196x441xbf16, #tpu.memory_space<vmem>>, vector<196x441xbf16>
    %9 = vector.extract_strided_slice %7 {offsets = [0, 0], sizes = [8, 196], strides = [1, 1]} : vector<8x392xf32> to vector<8x196xf32>
    %10 = arith.truncf %9 : vector<8x196xf32> to vector<8x196xbf16>
    %cst_8 = arith.constant dense<0.000000e+00> : vector<8x441xf32>
    %11 = tpu.matmul %10, %8, %cst_8 {dimension_numbers = #tpu.dot_dimension_numbers<[1], [0], [0], [1], [0, 0, 1, 1], [], []>} : vector<8x196xbf16>, vector<196x441xbf16>, vector<8x441xf32> -> vector<8x441xf32>
    %12 = vector.extract_strided_slice %11 {offsets = [0, 0], sizes = [8, 49], strides = [1, 1]} : vector<8x441xf32> to vector<8x49xf32>
    %13 = vector.extract_strided_slice %11 {offsets = [0, 49], sizes = [8, 49], strides = [1, 1]} : vector<8x441xf32> to vector<8x49xf32>
    %14 = vector.extract_strided_slice %11 {offsets = [0, 98], sizes = [8, 49], strides = [1, 1]} : vector<8x441xf32> to vector<8x49xf32>
    %15 = vector.extract_strided_slice %11 {offsets = [0, 147], sizes = [8, 49], strides = [1, 1]} : vector<8x441xf32> to vector<8x49xf32>
    %16 = vector.extract_strided_slice %11 {offsets = [0, 196], sizes = [8, 49], strides = [1, 1]} : vector<8x441xf32> to vector<8x49xf32>
    %17 = vector.extract_strided_slice %11 {offsets = [0, 245], sizes = [8, 49], strides = [1, 1]} : vector<8x441xf32> to vector<8x49xf32>
    %18 = vector.extract_strided_slice %11 {offsets = [0, 294], sizes = [8, 49], strides = [1, 1]} : vector<8x441xf32> to vector<8x49xf32>
    %19 = vector.extract_strided_slice %11 {offsets = [0, 343], sizes = [8, 49], strides = [1, 1]} : vector<8x441xf32> to vector<8x49xf32>
    %20 = vector.extract_strided_slice %11 {offsets = [0, 392], sizes = [8, 49], strides = [1, 1]} : vector<8x441xf32> to vector<8x49xf32>
    %21 = tpu.concatenate %12, %13, %14, %15, %16, %17, %18, %19, %20 in 0 : vector<8x49xf32>, vector<8x49xf32>, vector<8x49xf32>, vector<8x49xf32>, vector<8x49xf32>, vector<8x49xf32>, vector<8x49xf32>, vector<8x49xf32>, vector<8x49xf32> -> vector<72x49xf32>
    %22 = vector.extract_strided_slice %7 {offsets = [0, 196], sizes = [8, 196], strides = [1, 1]} : vector<8x392xf32> to vector<8x196xf32>
    %23 = arith.truncf %22 : vector<8x196xf32> to vector<8x196xbf16>
    %cst_9 = arith.constant dense<0.000000e+00> : vector<8x441xf32>
    %24 = tpu.matmul %23, %8, %cst_9 {dimension_numbers = #tpu.dot_dimension_numbers<[1], [0], [0], [1], [0, 0, 1, 1], [], []>} : vector<8x196xbf16>, vector<196x441xbf16>, vector<8x441xf32> -> vector<8x441xf32>
    %25 = vector.extract_strided_slice %24 {offsets = [0, 0], sizes = [8, 49], strides = [1, 1]} : vector<8x441xf32> to vector<8x49xf32>
    %26 = vector.extract_strided_slice %24 {offsets = [0, 49], sizes = [8, 49], strides = [1, 1]} : vector<8x441xf32> to vector<8x49xf32>
    %27 = vector.extract_strided_slice %24 {offsets = [0, 98], sizes = [8, 49], strides = [1, 1]} : vector<8x441xf32> to vector<8x49xf32>
    %28 = vector.extract_strided_slice %24 {offsets = [0, 147], sizes = [8, 49], strides = [1, 1]} : vector<8x441xf32> to vector<8x49xf32>
    %29 = vector.extract_strided_slice %24 {offsets = [0, 196], sizes = [8, 49], strides = [1, 1]} : vector<8x441xf32> to vector<8x49xf32>
    %30 = vector.extract_strided_slice %24 {offsets = [0, 245], sizes = [8, 49], strides = [1, 1]} : vector<8x441xf32> to vector<8x49xf32>
    %31 = vector.extract_strided_slice %24 {offsets = [0, 294], sizes = [8, 49], strides = [1, 1]} : vector<8x441xf32> to vector<8x49xf32>
    %32 = vector.extract_strided_slice %24 {offsets = [0, 343], sizes = [8, 49], strides = [1, 1]} : vector<8x441xf32> to vector<8x49xf32>
    %33 = vector.extract_strided_slice %24 {offsets = [0, 392], sizes = [8, 49], strides = [1, 1]} : vector<8x441xf32> to vector<8x49xf32>
    %34 = tpu.concatenate %25, %26, %27, %28, %29, %30, %31, %32, %33 in 0 : vector<8x49xf32>, vector<8x49xf32>, vector<8x49xf32>, vector<8x49xf32>, vector<8x49xf32>, vector<8x49xf32>, vector<8x49xf32>, vector<8x49xf32>, vector<8x49xf32> -> vector<72x49xf32>
    %35 = tpu.concatenate %21, %34 in 1 : vector<72x49xf32>, vector<72x49xf32> -> vector<72x98xf32>
    %c0_10 = arith.constant 0 : index
    %c0_11 = arith.constant 0 : index
    %36 = vector.load %arg5[%c0_10, %c0_11] : memref<16x72xf32, #tpu.memory_space<vmem>>, vector<16x72xf32>
    %cst_12 = arith.constant dense<0.000000e+00> : vector<16x98xf32>
    %37 = tpu.matmul %36, %35, %cst_12 {dimension_numbers = #tpu.dot_dimension_numbers<[1], [0], [0], [1], [0, 0, 1, 1], [], []>} : vector<16x72xf32>, vector<72x98xf32>, vector<16x98xf32> -> vector<16x98xf32>
    %c0_13 = arith.constant 0 : index
    %c0_14 = arith.constant 0 : index
    %38 = vector.load %arg6[%c0_13, %c0_14] : memref<16x1xf32, #tpu.memory_space<vmem>>, vector<16x1xf32>
    %39 = vector.broadcast %38 : vector<16x1xf32> to vector<16x98xf32>
    %40 = arith.addf %37, %39 : vector<16x98xf32>
    %cst_15 = arith.constant dense<0.000000e+00> : vector<16xf32>
    %41 = vector.multi_reduction <add>, %40, %cst_15 [1] : vector<16x98xf32> to vector<16xf32>
    %42 = vector.shape_cast %41 : vector<16xf32> to vector<16x1xf32>
    %cst_16 = arith.constant 9.800000e+01 : f32
    %43 = vector.broadcast %cst_16 : f32 to vector<16x1xf32>
    %44 = arith.divf %42, %43 : vector<16x1xf32>
    %45 = vector.broadcast %44 : vector<16x1xf32> to vector<16x98xf32>
    %46 = arith.subf %40, %45 : vector<16x98xf32>
    %47 = vector.broadcast %44 : vector<16x1xf32> to vector<16x98xf32>
    %48 = arith.subf %40, %47 : vector<16x98xf32>
    %49 = arith.mulf %46, %48 : vector<16x98xf32>
    %cst_17 = arith.constant dense<0.000000e+00> : vector<16xf32>
    %50 = vector.multi_reduction <add>, %49, %cst_17 [1] : vector<16x98xf32> to vector<16xf32>
    %51 = vector.shape_cast %50 : vector<16xf32> to vector<16x1xf32>
    %cst_18 = arith.constant 9.800000e+01 : f32
    %52 = vector.broadcast %cst_18 : f32 to vector<16x1xf32>
    %53 = arith.divf %51, %52 : vector<16x1xf32>
    %c0_19 = arith.constant 0 : index
    %c0_20 = arith.constant 0 : index
    %54 = vector.load %arg7[%c0_19, %c0_20] : memref<16x1xf32, #tpu.memory_space<vmem>>, vector<16x1xf32>
    %cst_21 = arith.constant 9.99999974E-6 : f32
    %55 = vector.broadcast %cst_21 : f32 to vector<16x1xf32>
    %56 = arith.addf %53, %55 : vector<16x1xf32>
    %57 = math.rsqrt %56 : vector<16x1xf32>
    %58 = arith.mulf %54, %57 : vector<16x1xf32>
    %c0_22 = arith.constant 0 : index
    %c0_23 = arith.constant 0 : index
    %59 = vector.load %arg8[%c0_22, %c0_23] : memref<16x1xf32, #tpu.memory_space<vmem>>, vector<16x1xf32>
    %60 = arith.mulf %44, %58 : vector<16x1xf32>
    %61 = arith.subf %59, %60 : vector<16x1xf32>
    %62 = vector.broadcast %58 : vector<16x1xf32> to vector<16x98xf32>
    %63 = arith.mulf %40, %62 : vector<16x98xf32>
    %64 = vector.broadcast %61 : vector<16x1xf32> to vector<16x98xf32>
    %65 = arith.addf %63, %64 : vector<16x98xf32>
    %cst_24 = arith.constant 0.000000e+00 : f32
    %66 = vector.broadcast %cst_24 : f32 to vector<16x98xf32>
    %67 = arith.maximumf %65, %66 : vector<16x98xf32>
    %c0_25 = arith.constant 0 : index
    %c0_26 = arith.constant 0 : index
    %68 = vector.load %arg2[%c0_25, %c0_26] : memref<49x81xbf16, #tpu.memory_space<vmem>>, vector<49x81xbf16>
    %69 = vector.extract_strided_slice %67 {offsets = [0, 0], sizes = [16, 49], strides = [1, 1]} : vector<16x98xf32> to vector<16x49xf32>
    %70 = arith.truncf %69 : vector<16x49xf32> to vector<16x49xbf16>
    %cst_27 = arith.constant dense<0.000000e+00> : vector<16x81xf32>
    %71 = tpu.matmul %70, %68, %cst_27 {dimension_numbers = #tpu.dot_dimension_numbers<[1], [0], [0], [1], [0, 0, 1, 1], [], []>} : vector<16x49xbf16>, vector<49x81xbf16>, vector<16x81xf32> -> vector<16x81xf32>
    %72 = vector.extract_strided_slice %71 {offsets = [0, 0], sizes = [16, 9], strides = [1, 1]} : vector<16x81xf32> to vector<16x9xf32>
    %73 = vector.extract_strided_slice %71 {offsets = [0, 9], sizes = [16, 9], strides = [1, 1]} : vector<16x81xf32> to vector<16x9xf32>
    %74 = vector.extract_strided_slice %71 {offsets = [0, 18], sizes = [16, 9], strides = [1, 1]} : vector<16x81xf32> to vector<16x9xf32>
    %75 = vector.extract_strided_slice %71 {offsets = [0, 27], sizes = [16, 9], strides = [1, 1]} : vector<16x81xf32> to vector<16x9xf32>
    %76 = vector.extract_strided_slice %71 {offsets = [0, 36], sizes = [16, 9], strides = [1, 1]} : vector<16x81xf32> to vector<16x9xf32>
    %77 = vector.extract_strided_slice %71 {offsets = [0, 45], sizes = [16, 9], strides = [1, 1]} : vector<16x81xf32> to vector<16x9xf32>
    %78 = vector.extract_strided_slice %71 {offsets = [0, 54], sizes = [16, 9], strides = [1, 1]} : vector<16x81xf32> to vector<16x9xf32>
    %79 = vector.extract_strided_slice %71 {offsets = [0, 63], sizes = [16, 9], strides = [1, 1]} : vector<16x81xf32> to vector<16x9xf32>
    %80 = vector.extract_strided_slice %71 {offsets = [0, 72], sizes = [16, 9], strides = [1, 1]} : vector<16x81xf32> to vector<16x9xf32>
    %81 = tpu.concatenate %72, %73, %74, %75, %76, %77, %78, %79, %80 in 0 : vector<16x9xf32>, vector<16x9xf32>, vector<16x9xf32>, vector<16x9xf32>, vector<16x9xf32>, vector<16x9xf32>, vector<16x9xf32>, vector<16x9xf32>, vector<16x9xf32> -> vector<144x9xf32>
    %82 = vector.extract_strided_slice %67 {offsets = [0, 49], sizes = [16, 49], strides = [1, 1]} : vector<16x98xf32> to vector<16x49xf32>
    %83 = arith.truncf %82 : vector<16x49xf32> to vector<16x49xbf16>
    %cst_28 = arith.constant dense<0.000000e+00> : vector<16x81xf32>
    %84 = tpu.matmul %83, %68, %cst_28 {dimension_numbers = #tpu.dot_dimension_numbers<[1], [0], [0], [1], [0, 0, 1, 1], [], []>} : vector<16x49xbf16>, vector<49x81xbf16>, vector<16x81xf32> -> vector<16x81xf32>
    %85 = vector.extract_strided_slice %84 {offsets = [0, 0], sizes = [16, 9], strides = [1, 1]} : vector<16x81xf32> to vector<16x9xf32>
    %86 = vector.extract_strided_slice %84 {offsets = [0, 9], sizes = [16, 9], strides = [1, 1]} : vector<16x81xf32> to vector<16x9xf32>
    %87 = vector.extract_strided_slice %84 {offsets = [0, 18], sizes = [16, 9], strides = [1, 1]} : vector<16x81xf32> to vector<16x9xf32>
    %88 = vector.extract_strided_slice %84 {offsets = [0, 27], sizes = [16, 9], strides = [1, 1]} : vector<16x81xf32> to vector<16x9xf32>
    %89 = vector.extract_strided_slice %84 {offsets = [0, 36], sizes = [16, 9], strides = [1, 1]} : vector<16x81xf32> to vector<16x9xf32>
    %90 = vector.extract_strided_slice %84 {offsets = [0, 45], sizes = [16, 9], strides = [1, 1]} : vector<16x81xf32> to vector<16x9xf32>
    %91 = vector.extract_strided_slice %84 {offsets = [0, 54], sizes = [16, 9], strides = [1, 1]} : vector<16x81xf32> to vector<16x9xf32>
    %92 = vector.extract_strided_slice %84 {offsets = [0, 63], sizes = [16, 9], strides = [1, 1]} : vector<16x81xf32> to vector<16x9xf32>
    %93 = vector.extract_strided_slice %84 {offsets = [0, 72], sizes = [16, 9], strides = [1, 1]} : vector<16x81xf32> to vector<16x9xf32>
    %94 = tpu.concatenate %85, %86, %87, %88, %89, %90, %91, %92, %93 in 0 : vector<16x9xf32>, vector<16x9xf32>, vector<16x9xf32>, vector<16x9xf32>, vector<16x9xf32>, vector<16x9xf32>, vector<16x9xf32>, vector<16x9xf32>, vector<16x9xf32> -> vector<144x9xf32>
    %95 = tpu.concatenate %81, %94 in 1 : vector<144x9xf32>, vector<144x9xf32> -> vector<144x18xf32>
    %c0_29 = arith.constant 0 : index
    %c0_30 = arith.constant 0 : index
    %96 = vector.load %arg9[%c0_29, %c0_30] : memref<32x144xf32, #tpu.memory_space<vmem>>, vector<32x144xf32>
    %cst_31 = arith.constant dense<0.000000e+00> : vector<32x18xf32>
    %97 = tpu.matmul %96, %95, %cst_31 {dimension_numbers = #tpu.dot_dimension_numbers<[1], [0], [0], [1], [0, 0, 1, 1], [], []>} : vector<32x144xf32>, vector<144x18xf32>, vector<32x18xf32> -> vector<32x18xf32>
    %c0_32 = arith.constant 0 : index
    %c0_33 = arith.constant 0 : index
    %98 = vector.load %arg10[%c0_32, %c0_33] : memref<32x1xf32, #tpu.memory_space<vmem>>, vector<32x1xf32>
    %99 = vector.broadcast %98 : vector<32x1xf32> to vector<32x18xf32>
    %100 = arith.addf %97, %99 : vector<32x18xf32>
    %cst_34 = arith.constant 0.000000e+00 : f32
    %101 = vector.broadcast %cst_34 : f32 to vector<32x18xf32>
    %102 = arith.maximumf %100, %101 : vector<32x18xf32>
    %103 = vector.extract_strided_slice %102 {offsets = [0, 0], sizes = [32, 1], strides = [1, 1]} : vector<32x18xf32> to vector<32x1xf32>
    %104 = vector.extract_strided_slice %102 {offsets = [0, 1], sizes = [32, 1], strides = [1, 1]} : vector<32x18xf32> to vector<32x1xf32>
    %105 = vector.extract_strided_slice %102 {offsets = [0, 2], sizes = [32, 1], strides = [1, 1]} : vector<32x18xf32> to vector<32x1xf32>
    %106 = vector.extract_strided_slice %102 {offsets = [0, 3], sizes = [32, 1], strides = [1, 1]} : vector<32x18xf32> to vector<32x1xf32>
    %107 = vector.extract_strided_slice %102 {offsets = [0, 4], sizes = [32, 1], strides = [1, 1]} : vector<32x18xf32> to vector<32x1xf32>
    %108 = vector.extract_strided_slice %102 {offsets = [0, 5], sizes = [32, 1], strides = [1, 1]} : vector<32x18xf32> to vector<32x1xf32>
    %109 = vector.extract_strided_slice %102 {offsets = [0, 6], sizes = [32, 1], strides = [1, 1]} : vector<32x18xf32> to vector<32x1xf32>
    %110 = vector.extract_strided_slice %102 {offsets = [0, 7], sizes = [32, 1], strides = [1, 1]} : vector<32x18xf32> to vector<32x1xf32>
    %111 = vector.extract_strided_slice %102 {offsets = [0, 8], sizes = [32, 1], strides = [1, 1]} : vector<32x18xf32> to vector<32x1xf32>
    %112 = tpu.concatenate %103, %104, %105, %106, %107, %108, %109, %110, %111 in 0 : vector<32x1xf32>, vector<32x1xf32>, vector<32x1xf32>, vector<32x1xf32>, vector<32x1xf32>, vector<32x1xf32>, vector<32x1xf32>, vector<32x1xf32>, vector<32x1xf32> -> vector<288x1xf32>
    %113 = vector.extract_strided_slice %102 {offsets = [0, 9], sizes = [32, 1], strides = [1, 1]} : vector<32x18xf32> to vector<32x1xf32>
    %114 = vector.extract_strided_slice %102 {offsets = [0, 10], sizes = [32, 1], strides = [1, 1]} : vector<32x18xf32> to vector<32x1xf32>
    %115 = vector.extract_strided_slice %102 {offsets = [0, 11], sizes = [32, 1], strides = [1, 1]} : vector<32x18xf32> to vector<32x1xf32>
    %116 = vector.extract_strided_slice %102 {offsets = [0, 12], sizes = [32, 1], strides = [1, 1]} : vector<32x18xf32> to vector<32x1xf32>
    %117 = vector.extract_strided_slice %102 {offsets = [0, 13], sizes = [32, 1], strides = [1, 1]} : vector<32x18xf32> to vector<32x1xf32>
    %118 = vector.extract_strided_slice %102 {offsets = [0, 14], sizes = [32, 1], strides = [1, 1]} : vector<32x18xf32> to vector<32x1xf32>
    %119 = vector.extract_strided_slice %102 {offsets = [0, 15], sizes = [32, 1], strides = [1, 1]} : vector<32x18xf32> to vector<32x1xf32>
    %120 = vector.extract_strided_slice %102 {offsets = [0, 16], sizes = [32, 1], strides = [1, 1]} : vector<32x18xf32> to vector<32x1xf32>
    %121 = vector.extract_strided_slice %102 {offsets = [0, 17], sizes = [32, 1], strides = [1, 1]} : vector<32x18xf32> to vector<32x1xf32>
    %122 = tpu.concatenate %113, %114, %115, %116, %117, %118, %119, %120, %121 in 0 : vector<32x1xf32>, vector<32x1xf32>, vector<32x1xf32>, vector<32x1xf32>, vector<32x1xf32>, vector<32x1xf32>, vector<32x1xf32>, vector<32x1xf32>, vector<32x1xf32> -> vector<288x1xf32>
    %123 = tpu.concatenate %112, %122 in 1 : vector<288x1xf32>, vector<288x1xf32> -> vector<288x2xf32>
    %c0_35 = arith.constant 0 : index
    %c0_36 = arith.constant 0 : index
    %124 = vector.load %arg11[%c0_35, %c0_36] : memref<128x288xf32, #tpu.memory_space<vmem>>, vector<128x288xf32>
    %cst_37 = arith.constant dense<0.000000e+00> : vector<128x2xf32>
    %125 = tpu.matmul %124, %123, %cst_37 {dimension_numbers = #tpu.dot_dimension_numbers<[1], [0], [0], [1], [0, 0, 1, 1], [], []>} : vector<128x288xf32>, vector<288x2xf32>, vector<128x2xf32> -> vector<128x2xf32>
    %c0_38 = arith.constant 0 : index
    %c0_39 = arith.constant 0 : index
    %126 = vector.load %arg12[%c0_38, %c0_39] : memref<128x1xf32, #tpu.memory_space<vmem>>, vector<128x1xf32>
    %127 = vector.broadcast %126 : vector<128x1xf32> to vector<128x2xf32>
    %128 = arith.addf %125, %127 : vector<128x2xf32>
    %cst_40 = arith.constant 0.000000e+00 : f32
    %129 = vector.broadcast %cst_40 : f32 to vector<128x2xf32>
    %130 = arith.maximumf %128, %129 : vector<128x2xf32>
    %c0_41 = arith.constant 0 : index
    %c0_42 = arith.constant 0 : index
    %131 = vector.load %arg13[%c0_41, %c0_42] : memref<8x128xf32, #tpu.memory_space<vmem>>, vector<8x128xf32>
    %cst_43 = arith.constant dense<0.000000e+00> : vector<8x2xf32>
    %132 = tpu.matmul %131, %130, %cst_43 {dimension_numbers = #tpu.dot_dimension_numbers<[1], [0], [0], [1], [0, 0, 1, 1], [], []>} : vector<8x128xf32>, vector<128x2xf32>, vector<8x2xf32> -> vector<8x2xf32>
    %c0_44 = arith.constant 0 : index
    %c0_45 = arith.constant 0 : index
    %133 = vector.load %arg14[%c0_44, %c0_45] : memref<8x1xf32, #tpu.memory_space<vmem>>, vector<8x1xf32>
    %134 = vector.broadcast %133 : vector<8x1xf32> to vector<8x2xf32>
    %135 = arith.addf %132, %134 : vector<8x2xf32>
    %136 = vector.extract_strided_slice %135 {offsets = [0, 0], sizes = [4, 2], strides = [1, 1]} : vector<8x2xf32> to vector<4x2xf32>
    %137 = vector.extract_strided_slice %135 {offsets = [4, 0], sizes = [4, 2], strides = [1, 1]} : vector<8x2xf32> to vector<4x2xf32>
    %138 = math.exp %137 : vector<4x2xf32>
    %c0_46 = arith.constant 0 : index
    %c0_47 = arith.constant 0 : index
    %139 = vector.load %arg15[%c0_46, %c0_47] : memref<4x2xf32, #tpu.memory_space<vmem>>, vector<4x2xf32>
    %140 = arith.mulf %138, %139 : vector<4x2xf32>
    %141 = arith.addf %136, %140 : vector<4x2xf32>
    %c0_48 = arith.constant 0 : index
    %c0_49 = arith.constant 0 : index
    %142 = vector.load %arg16[%c0_48, %c0_49] : memref<4x2xf32, #tpu.memory_space<vmem>>, vector<4x2xf32>
    tpu.vector_store %arg16[%c0_48, %c0_49], %141 {strides = array<i32>} : memref<4x2xf32, #tpu.memory_space<vmem>>, vector<4x2xf32>,
    %143 = arith.mulf %138, %138 : vector<4x2xf32>
    %144 = arith.mulf %136, %136 : vector<4x2xf32>
    %145 = arith.addf %143, %144 : vector<4x2xf32>
    %146 = arith.subf %145, %137 : vector<4x2xf32>
    %cst_50 = arith.constant 5.000000e-01 : f32
    %147 = vector.broadcast %cst_50 : f32 to vector<4x2xf32>
    %148 = arith.subf %146, %147 : vector<4x2xf32>
    %149 = vector.shape_cast %148 : vector<4x2xf32> to vector<1x4x2xf32>
    %cst_51 = arith.constant dense<0.000000e+00> : vector<1xf32>
    %150 = vector.multi_reduction <add>, %149, %cst_51 [1, 2] : vector<1x4x2xf32> to vector<1xf32>
    %151 = vector.shape_cast %150 : vector<1xf32> to vector<1x1x1xf32>
    %152 = vector.extract %151[0, 0, 0] : f32 from vector<1x1x1xf32>
    %153 = vector.broadcast %152 : f32 to vector<1x1xf32>
    %c0_52 = arith.constant 0 : index
    %c0_53 = arith.constant 0 : index
    %154 = vector.load %arg17[%c0_52, %c0_53] : memref<1x1xf32, #tpu.memory_space<vmem>>, vector<1x1xf32>
    tpu.vector_store %arg17[%c0_52, %c0_53], %153 {strides = array<i32>} : memref<1x1xf32, #tpu.memory_space<vmem>>, vector<1x1xf32>,
    return
  }
}

</mosaic_0001>

<llo_original>
// kernel: conv_encoder_forward.1
$region0: #{conv_encoder_forward.1}
  #allocation0 [shape = 'u32[]', space=smem, size = 0x4, offset = 0x4, fixed_abs, tag = 'smem constant byte address 0x4 - core index']
  #allocation1 [shape = 'u32[72,128]{1,0:T(1,128)}', space=vmem, size = 0x9000, scoped, tag = 'internal scratch']
  %s0 = inlined_call_operand.vmem [shape: f32[9,392], index: 0, kind: input, shape index: {}]
  %s1 = inlined_call_operand.vmem [shape: bf16[196,441], index: 1, kind: input, shape index: {}]
  %s2 = inlined_call_operand.vmem [shape: bf16[49,81], index: 2, kind: input, shape index: {}]
  %s3 = inlined_call_operand.vmem [shape: f32[8,9], index: 3, kind: input, shape index: {}]
  %s4 = inlined_call_operand.vmem [shape: f32[8,1], index: 4, kind: input, shape index: {}]
  %s5 = inlined_call_operand.vmem [shape: f32[16,72], index: 5, kind: input, shape index: {}]
  %s6 = inlined_call_operand.vmem [shape: f32[16,1], index: 6, kind: input, shape index: {}]
  %s7 = inlined_call_operand.vmem [shape: f32[16,1], index: 7, kind: input, shape index: {}]
  %s8 = inlined_call_operand.vmem [shape: f32[16,1], index: 8, kind: input, shape index: {}]
  %s9 = inlined_call_operand.vmem [shape: f32[32,144], index: 9, kind: input, shape index: {}]
  %s10 = inlined_call_operand.vmem [shape: f32[32,1], index: 10, kind: input, shape index: {}]
  %s11 = inlined_call_operand.vmem [shape: f32[128,288], index: 11, kind: input, shape index: {}]
  %s12 = inlined_call_operand.vmem [shape: f32[128,1], index: 12, kind: input, shape index: {}]
  %s13 = inlined_call_operand.vmem [shape: f32[8,128], index: 13, kind: input, shape index: {}]
  %s14 = inlined_call_operand.vmem [shape: f32[8,1], index: 14, kind: input, shape index: {}]
  %s15 = inlined_call_operand.vmem [shape: f32[4,2], index: 15, kind: input, shape index: {}]
  %s16 = inlined_call_operand.vmem [shape: f32[4,2], index: 16, kind: output, shape index: {0}]
  %s17 = inlined_call_operand.hbm [shape: f32[1,1], index: 17, kind: output, shape index: {1}]
  %18 = xla_tuple %s16, %s17
  %s19 = sld [smem:[#allocation0]]
  $region82: #{conv_encoder_forward.1} parent=0
    _
  %s21 = ssub.s32 1, %s19
  %s22 = scalar_select 0, %s21, %s19
  $region1: #{conv_encoder_forward.1} parent=0
    #allocation2 [shape = 'u8[512]{0}', space=vmem, size = 0x400, scoped, tag = 'output window, operand 1, single buffered']
    #allocation3 [shape = 's32[1]{0}', space=sflag, size = 0x4, scoped, tag = 'scoped memory for conv_encoder_forward.1']
    %23 = vsyncpa [#allocation3], 0
    // Predicated region
    $region2: #{conv_encoder_forward.1} parent=1 // pred_check
      _
    $region3: #{conv_encoder_forward.1} parent=1 // pred_check_branch
      %25 = sbr.rel (0) target = $region5
    $region4: #{conv_encoder_forward.1} parent=1 // pred_region
      _
    $region5: #{conv_encoder_forward.1} parent=1 // pred_fallthru
      _
    // Predicated region
    $region6: #{conv_encoder_forward.1} parent=1 // pred_check
      _
    $region7: #{conv_encoder_forward.1} parent=1 // pred_check_branch
      %27 = sbr.rel (0) target = $region9
    $region8: #{conv_encoder_forward.1} parent=1 // pred_region
      _
    $region9: #{conv_encoder_forward.1} parent=1 // pred_fallthru
      _
    // Predicated region
    $region10: #{conv_encoder_forward.1} parent=1 // pred_check
      _
    $region11: #{conv_encoder_forward.1} parent=1 // pred_check_branch
      %29 = sbr.rel (0) target = $region13
    $region12: #{conv_encoder_forward.1} parent=1 // pred_region
      _
    $region13: #{conv_encoder_forward.1} parent=1 // pred_fallthru
      _
    // Predicated region
    $region14: #{conv_encoder_forward.1} parent=1 // pred_check
      _
    $region15: #{conv_encoder_forward.1} parent=1 // pred_check_branch
      %31 = sbr.rel (0) target = $region17
    $region16: #{conv_encoder_forward.1} parent=1 // pred_region
      _
    $region17: #{conv_encoder_forward.1} parent=1 // pred_fallthru
      _
    // Predicated region
    $region18: #{conv_encoder_forward.1} parent=1 // pred_check
      _
    $region19: #{conv_encoder_forward.1} parent=1 // pred_check_branch
      %33 = sbr.rel (0) target = $region21
    $region20: #{conv_encoder_forward.1} parent=1 // pred_region
      _
    $region21: #{conv_encoder_forward.1} parent=1 // pred_fallthru
      _
    // Predicated region
    $region22: #{conv_encoder_forward.1} parent=1 // pred_check
      _
    $region23: #{conv_encoder_forward.1} parent=1 // pred_check_branch
      %35 = sbr.rel (0) target = $region25
    $region24: #{conv_encoder_forward.1} parent=1 // pred_region
      _
    $region25: #{conv_encoder_forward.1} parent=1 // pred_fallthru
      _
    // Predicated region
    $region26: #{conv_encoder_forward.1} parent=1 // pred_check
      _
    $region27: #{conv_encoder_forward.1} parent=1 // pred_check_branch
      %37 = sbr.rel (0) target = $region29
    $region28: #{conv_encoder_forward.1} parent=1 // pred_region
      _
    $region29: #{conv_encoder_forward.1} parent=1 // pred_fallthru
      _
    // Predicated region
    $region30: #{conv_encoder_forward.1} parent=1 // pred_check
      _
    $region31: #{conv_encoder_forward.1} parent=1 // pred_check_branch
      %39 = sbr.rel (0) target = $region33
    $region32: #{conv_encoder_forward.1} parent=1 // pred_region
      _
    $region33: #{conv_encoder_forward.1} parent=1 // pred_fallthru
      _
    // Predicated region
    $region34: #{conv_encoder_forward.1} parent=1 // pred_check
      _
    $region35: #{conv_encoder_forward.1} parent=1 // pred_check_branch
      %41 = sbr.rel (0) target = $region37
    $region36: #{conv_encoder_forward.1} parent=1 // pred_region
      _
    $region37: #{conv_encoder_forward.1} parent=1 // pred_fallthru
      _
    // Predicated region
    $region38: #{conv_encoder_forward.1} parent=1 // pred_check
      _
    $region39: #{conv_encoder_forward.1} parent=1 // pred_check_branch
      %43 = sbr.rel (0) target = $region41
    $region40: #{conv_encoder_forward.1} parent=1 // pred_region
      _
    $region41: #{conv_encoder_forward.1} parent=1 // pred_fallthru
      _
    // Predicated region
    $region42: #{conv_encoder_forward.1} parent=1 // pred_check
      _
    $region43: #{conv_encoder_forward.1} parent=1 // pred_check_branch
      %45 = sbr.rel (0) target = $region45
    $region44: #{conv_encoder_forward.1} parent=1 // pred_region
      _
    $region45: #{conv_encoder_forward.1} parent=1 // pred_fallthru
      _
    // Predicated region
    $region46: #{conv_encoder_forward.1} parent=1 // pred_check
      _
    $region47: #{conv_encoder_forward.1} parent=1 // pred_check_branch
      %47 = sbr.rel (0) target = $region49
    $region48: #{conv_encoder_forward.1} parent=1 // pred_region
      _
    $region49: #{conv_encoder_forward.1} parent=1 // pred_fallthru
      _
    // Predicated region
    $region50: #{conv_encoder_forward.1} parent=1 // pred_check
      _
    $region51: #{conv_encoder_forward.1} parent=1 // pred_check_branch
      %49 = sbr.rel (0) target = $region53
    $region52: #{conv_encoder_forward.1} parent=1 // pred_region
      _
    $region53: #{conv_encoder_forward.1} parent=1 // pred_fallthru
      _
    // Predicated region
    $region54: #{conv_encoder_forward.1} parent=1 // pred_check
      _
    $region55: #{conv_encoder_forward.1} parent=1 // pred_check_branch
      %51 = sbr.rel (0) target = $region57
    $region56: #{conv_encoder_forward.1} parent=1 // pred_region
      _
    $region57: #{conv_encoder_forward.1} parent=1 // pred_fallthru
      _
    // Predicated region
    $region58: #{conv_encoder_forward.1} parent=1 // pred_check
      _
    $region59: #{conv_encoder_forward.1} parent=1 // pred_check_branch
      %53 = sbr.rel (0) target = $region61
    $region60: #{conv_encoder_forward.1} parent=1 // pred_region
      _
    $region61: #{conv_encoder_forward.1} parent=1 // pred_fallthru
      _
    // Predicated region
    $region62: #{conv_encoder_forward.1} parent=1 // pred_check
      _
    $region63: #{conv_encoder_forward.1} parent=1 // pred_check_branch
      %55 = sbr.rel (0) target = $region65
    $region64: #{conv_encoder_forward.1} parent=1 // pred_region
      _
    $region65: #{conv_encoder_forward.1} parent=1 // pred_fallthru
      _
    %v57 = vld [vmem:[%s3] sm:$0xff]
    %v58 = vld [vmem:[%s0] sm:$0xff]
    %v59 = vld [vmem:[%s0 + $0x8] sm:$0xff]
    %v60 = vld [vmem:[%s0 + $0x10] sm:$0xff]
    %v61 = vld [vmem:[%s0 + $0x18] sm:$0xff]
    %v62 = vld [vmem:[%s0 + $0x20] sm:$0x1]
    %v63 = vld [vmem:[%s0 + $0x28] sm:$0x1]
    %v64 = vld [vmem:[%s0 + $0x30] sm:$0x1]
    %v65 = vld [vmem:[%s0 + $0x38] sm:$0x1]
    %v66 = vld [vmem:[%s4] sm:$0xff]
    %68 = vset.pattern.permute.xlu0 0
    %69 = vperm.xlu0 %68, %v66
    %v70 = vpop.permute.xlu0 %69
    %vm72 = vcmask 72704
    %v74 = vsel %vm72, %v57, 0
    %vm76 = vcmask 1040384
    %v78 = vsel %vm76, %v62, 0
    %v81 = vsel %vm76, %v63, 0
    %v84 = vsel %vm76, %v64, 0
    %v87 = vsel %vm76, %v65, 0
    %89 = vmatpush.msra.mxu0 0.0
    %90 = vmatpush.msra.mxu0 0.0
    %91 = vmatpush.msra.mxu0 0.0
    %92 = vmatpush.msra.mxu0 0.0
    %93 = vmatpush.msra.mxu0 0.0
    %94 = vmatpush.msra.mxu0 0.0
    %95 = vmatpush.msra.mxu0 0.0
    %96 = vmatpush.msra.mxu0 0.0
    %97 = vmatpush.msra.mxu0 0.0
    %98 = vmatpush.msra.mxu0 0.0
    %99 = vmatpush.msra.mxu0 0.0
    %100 = vmatpush.msra.mxu0 0.0
    %101 = vmatpush.msra.mxu0 0.0
    %102 = vmatpush.msra.mxu0 0.0
    %103 = vmatpush.msra.mxu0 %v78
    %104 = vmatpush.msra.mxu0 %v58
    %105 = vmatmul.f32.gmra.mxu0 %v74
    %v106 = vpop.f32.mrf.mxu0
    %v107 = vadd.f32 %v70, %v106
    %108 = vdwg.mxu0
    %109 = vmatpush.msra.mxu0 0.0
    %110 = vmatpush.msra.mxu0 0.0
    %111 = vmatpush.msra.mxu0 0.0
    %112 = vmatpush.msra.mxu0 0.0
    %113 = vmatpush.msra.mxu0 0.0
    %114 = vmatpush.msra.mxu0 0.0
    %115 = vmatpush.msra.mxu0 0.0
    %116 = vmatpush.msra.mxu0 0.0
    %117 = vmatpush.msra.mxu0 0.0
    %118 = vmatpush.msra.mxu0 0.0
    %119 = vmatpush.msra.mxu0 0.0
    %120 = vmatpush.msra.mxu0 0.0
    %121 = vmatpush.msra.mxu0 0.0
    %122 = vmatpush.msra.mxu0 0.0
    %123 = vmatpush.msra.mxu0 %v81
    %124 = vmatpush.msra.mxu0 %v59
    %125 = vmatmul.f32.gmra.mxu0 %v74
    %v126 = vpop.f32.mrf.mxu0
    %v127 = vadd.f32 %v70, %v126
    %128 = vdwg.mxu0
    %129 = vmatpush.msra.mxu0 0.0
    %130 = vmatpush.msra.mxu0 0.0
    %131 = vmatpush.msra.mxu0 0.0
    %132 = vmatpush.msra.mxu0 0.0
    %133 = vmatpush.msra.mxu0 0.0
    %134 = vmatpush.msra.mxu0 0.0
    %135 = vmatpush.msra.mxu0 0.0
    %136 = vmatpush.msra.mxu0 0.0
    %137 = vmatpush.msra.mxu0 0.0
    %138 = vmatpush.msra.mxu0 0.0
    %139 = vmatpush.msra.mxu0 0.0
    %140 = vmatpush.msra.mxu0 0.0
    %141 = vmatpush.msra.mxu0 0.0
    %142 = vmatpush.msra.mxu0 0.0
    %143 = vmatpush.msra.mxu0 %v84
    %144 = vmatpush.msra.mxu0 %v60
    %145 = vmatmul.f32.gmra.mxu0 %v74
    %v146 = vpop.f32.mrf.mxu0
    %v147 = vadd.f32 %v70, %v146
    %148 = vdwg.mxu0
    %149 = vmatpush.msra.mxu0 0.0
    %150 = vmatpush.msra.mxu0 0.0
    %151 = vmatpush.msra.mxu0 0.0
    %152 = vmatpush.msra.mxu0 0.0
    %153 = vmatpush.msra.mxu0 0.0
    %154 = vmatpush.msra.mxu0 0.0
    %155 = vmatpush.msra.mxu0 0.0
    %156 = vmatpush.msra.mxu0 0.0
    %157 = vmatpush.msra.mxu0 0.0
    %158 = vmatpush.msra.mxu0 0.0
    %159 = vmatpush.msra.mxu0 0.0
    %160 = vmatpush.msra.mxu0 0.0
    %161 = vmatpush.msra.mxu0 0.0
    %162 = vmatpush.msra.mxu0 0.0
    %163 = vmatpush.msra.mxu0 %v87
    %164 = vmatpush.msra.mxu0 %v61
    %165 = vmatmul.f32.gmra.mxu0 %v74
    %v166 = vpop.f32.mrf.mxu0
    %v167 = vadd.f32 %v70, %v166
    %168 = vdwg.mxu0
    %v169 = vmax.f32 %v107, 0.0
    %v170 = vmax.f32 %v127, 0.0
    %v171 = vmax.f32 %v147, 0.0
    %v172 = vmax.f32 %v167, 0.0
    %v173 = vld [vmem:[%s1] sm:$0xff]
    %v174 = vld [vmem:[%s1 + $0x8] sm:$0xff]
    %v175 = vld [vmem:[%s1 + $0x10] sm:$0xff]
    %v176 = vld [vmem:[%s1 + $0x18] sm:$0xff]
    %v177 = vld [vmem:[%s1 + $0x20] sm:$0xff]
    %v178 = vld [vmem:[%s1 + $0x28] sm:$0xff]
    %v179 = vld [vmem:[%s1 + $0x30] sm:$0xff]
    %v180 = vld [vmem:[%s1 + $0x38] sm:$0xff]
    %v181 = vld [vmem:[%s1 + $0x40] sm:$0xff]
    %v182 = vld [vmem:[%s1 + $0x48] sm:$0xff]
    %v183 = vld [vmem:[%s1 + $0x50] sm:$0xff]
    %v184 = vld [vmem:[%s1 + $0x58] sm:$0xff]
    %v185 = vld [vmem:[%s1 + $0x60] sm:$0xff]
    %v186 = vld [vmem:[%s1 + $0x68] sm:$0xff]
    %v187 = vld [vmem:[%s1 + $0x70] sm:$0xff]
    %v188 = vld [vmem:[%s1 + $0x78] sm:$0xff]
    %v189 = vld [vmem:[%s1 + $0x80] sm:$0xff]
    %v190 = vld [vmem:[%s1 + $0x88] sm:$0xff]
    %v191 = vld [vmem:[%s1 + $0x90] sm:$0xff]
    %v192 = vld [vmem:[%s1 + $0x98] sm:$0xff]
    %v193 = vld [vmem:[%s1 + $0xa0] sm:$0xff]
    %v194 = vld [vmem:[%s1 + $0xa8] sm:$0xff]
    %v195 = vld [vmem:[%s1 + $0xb0] sm:$0xff]
    %v196 = vld [vmem:[%s1 + $0xb8] sm:$0xff]
    %v197 = vld [vmem:[%s1 + $0xc0] sm:$0xff]
    %v198 = vld [vmem:[%s1 + $0xc8] sm:$0xff]
    %v199 = vld [vmem:[%s1 + $0xd0] sm:$0xff]
    %v200 = vld [vmem:[%s1 + $0xd8] sm:$0xff]
    %v201 = vld [vmem:[%s1 + $0xe0] sm:$0xff]
    %v202 = vld [vmem:[%s1 + $0xe8] sm:$0xff]
    %v203 = vld [vmem:[%s1 + $0xf0] sm:$0xff]
    %v204 = vld [vmem:[%s1 + $0xf8] sm:$0xff]
    %v205 = vld [vmem:[%s1 + $0x100] sm:$0xff]
    %v206 = vld [vmem:[%s1 + $0x108] sm:$0xff]
    %v207 = vld [vmem:[%s1 + $0x110] sm:$0xff]
    %v208 = vld [vmem:[%s1 + $0x118] sm:$0xff]
    %v209 = vld [vmem:[%s1 + $0x120] sm:$0xff]
    %v210 = vld [vmem:[%s1 + $0x128] sm:$0xff]
    %v211 = vld [vmem:[%s1 + $0x130] sm:$0xff]
    %v212 = vld [vmem:[%s1 + $0x138] sm:$0xff]
    %v213 = vld [vmem:[%s1 + $0x140] sm:$0xff]
    %v214 = vld [vmem:[%s1 + $0x148] sm:$0xff]
    %v215 = vld [vmem:[%s1 + $0x150] sm:$0xff]
    %v216 = vld [vmem:[%s1 + $0x158] sm:$0xff]
    %v217 = vld [vmem:[%s1 + $0x160] sm:$0xff]
    %v218 = vld [vmem:[%s1 + $0x168] sm:$0xff]
    %v219 = vld [vmem:[%s1 + $0x170] sm:$0xff]
    %v220 = vld [vmem:[%s1 + $0x178] sm:$0xff]
    %v221 = vld [vmem:[%s1 + $0x180] sm:$0x33]
    %v222 = vld [vmem:[%s1 + $0x188] sm:$0x33]
    %v223 = vpack.c.bf16 %v169, %v169
    %v224 = vpack.c.bf16 %v170, %v170
    %v275 = vunpack.c.l.b16 %v173
    %v276 = vunpack.c.h.b16 %v173
    %v277 = vunpack.c.l.b16 %v174
    %v278 = vunpack.c.h.b16 %v174
    %v279 = vunpack.c.l.b16 %v175
    %v280 = vunpack.c.h.b16 %v175
    %v281 = vunpack.c.l.b16 %v176
    %v282 = vunpack.c.h.b16 %v176
    %v283 = vunpack.c.l.b16 %v177
    %v284 = vunpack.c.h.b16 %v177
    %v285 = vunpack.c.l.b16 %v178
    %v286 = vunpack.c.h.b16 %v178
    %v287 = vunpack.c.l.b16 %v179
    %v288 = vunpack.c.h.b16 %v179
    %v289 = vunpack.c.l.b16 %v180
    %v290 = vunpack.c.h.b16 %v180
    %v291 = vunpack.c.l.b16 %v181
    %v292 = vunpack.c.h.b16 %v181
    %v293 = vunpack.c.l.b16 %v182
    %v294 = vunpack.c.h.b16 %v182
    %v295 = vunpack.c.l.b16 %v183
    %v296 = vunpack.c.h.b16 %v183
    %v297 = vunpack.c.l.b16 %v184
    %v298 = vunpack.c.h.b16 %v184
    %v299 = vunpack.c.l.b16 %v185
    %v300 = vunpack.c.h.b16 %v185
    %v301 = vunpack.c.l.b16 %v186
    %v302 = vunpack.c.h.b16 %v186
    %v303 = vunpack.c.l.b16 %v187
    %v304 = vunpack.c.h.b16 %v187
    %v305 = vunpack.c.l.b16 %v188
    %v306 = vunpack.c.h.b16 %v188
    %v307 = vunpack.c.l.b16 %v189
    %v308 = vunpack.c.h.b16 %v189
    %v309 = vunpack.c.l.b16 %v190
    %v310 = vunpack.c.h.b16 %v190
    %v311 = vunpack.c.l.b16 %v191
    %v312 = vunpack.c.h.b16 %v191
    %v313 = vunpack.c.l.b16 %v192
    %v314 = vunpack.c.h.b16 %v192
    %v315 = vunpack.c.l.b16 %v193
    %v316 = vunpack.c.h.b16 %v193
    %v317 = vunpack.c.l.b16 %v194
    %v318 = vunpack.c.h.b16 %v194
    %v319 = vunpack.c.l.b16 %v195
    %v320 = vunpack.c.h.b16 %v195
    %v321 = vunpack.c.l.b16 %v196
    %v322 = vunpack.c.h.b16 %v196
    %v323 = vunpack.c.l.b16 %v197
    %v324 = vunpack.c.h.b16 %v197
    %v325 = vunpack.c.l.b16 %v198
    %v326 = vunpack.c.h.b16 %v198
    %v327 = vunpack.c.l.b16 %v199
    %v328 = vunpack.c.h.b16 %v199
    %v329 = vunpack.c.l.b16 %v200
    %v330 = vunpack.c.h.b16 %v200
    %v331 = vunpack.c.l.b16 %v201
    %v332 = vunpack.c.h.b16 %v201
    %v333 = vunpack.c.l.b16 %v202
    %v334 = vunpack.c.h.b16 %v202
    %v335 = vunpack.c.l.b16 %v203
    %v336 = vunpack.c.h.b16 %v203
    %v337 = vunpack.c.l.b16 %v204
    %v338 = vunpack.c.h.b16 %v204
    %v339 = vunpack.c.l.b16 %v205
    %v340 = vunpack.c.h.b16 %v205
    %v341 = vunpack.c.l.b16 %v206
    %v342 = vunpack.c.h.b16 %v206
    %v343 = vunpack.c.l.b16 %v207
    %v344 = vunpack.c.h.b16 %v207
    %v345 = vunpack.c.l.b16 %v208
    %v346 = vunpack.c.h.b16 %v208
    %v347 = vunpack.c.l.b16 %v209
    %v348 = vunpack.c.h.b16 %v209
    %v349 = vunpack.c.l.b16 %v210
    %v350 = vunpack.c.h.b16 %v210
    %v351 = vunpack.c.l.b16 %v211
    %v352 = vunpack.c.h.b16 %v211
    %v353 = vunpack.c.l.b16 %v212
    %v354 = vunpack.c.h.b16 %v212
    %v355 = vunpack.c.l.b16 %v213
    %v356 = vunpack.c.h.b16 %v213
    %v357 = vunpack.c.l.b16 %v214
    %v358 = vunpack.c.h.b16 %v214
    %v359 = vunpack.c.l.b16 %v215
    %v360 = vunpack.c.h.b16 %v215
    %v361 = vunpack.c.l.b16 %v216
    %v362 = vunpack.c.h.b16 %v216
    %v363 = vunpack.c.l.b16 %v217
    %v364 = vunpack.c.h.b16 %v217
    %v365 = vunpack.c.l.b16 %v218
    %v366 = vunpack.c.h.b16 %v218
    %v367 = vunpack.c.l.b16 %v219
    %v368 = vunpack.c.h.b16 %v219
    %v369 = vunpack.c.l.b16 %v220
    %v370 = vunpack.c.h.b16 %v220
    %v371 = vunpack.c.l.b16 %v221
    %v372 = vunpack.c.h.b16 %v221
    %v373 = vunpack.c.l.b16 %v222
    %v374 = vunpack.c.h.b16 %v222
    %v375 = vpack.c.b16 %v279, %v275
    %v376 = vpack.c.b16 %v280, %v276
    %v377 = vpack.c.b16 %v281, %v277
    %v378 = vpack.c.b16 %v282, %v278
    %v379 = vpack.c.b16 %v287, %v283
    %v380 = vpack.c.b16 %v288, %v284
    %v381 = vpack.c.b16 %v289, %v285
    %v382 = vpack.c.b16 %v290, %v286
    %v383 = vpack.c.b16 %v295, %v291
    %v384 = vpack.c.b16 %v296, %v292
    %v385 = vpack.c.b16 %v297, %v293
    %v386 = vpack.c.b16 %v298, %v294
    %v387 = vpack.c.b16 %v303, %v299
    %v388 = vpack.c.b16 %v304, %v300
    %v389 = vpack.c.b16 %v305, %v301
    %v390 = vpack.c.b16 %v306, %v302
    %v391 = vpack.c.b16 %v311, %v307
    %v392 = vpack.c.b16 %v312, %v308
    %v393 = vpack.c.b16 %v313, %v309
    %v394 = vpack.c.b16 %v314, %v310
    %v395 = vpack.c.b16 %v319, %v315
    %v396 = vpack.c.b16 %v320, %v316
    %v397 = vpack.c.b16 %v321, %v317
    %v398 = vpack.c.b16 %v322, %v318
    %v399 = vpack.c.b16 %v327, %v323
    %v400 = vpack.c.b16 %v328, %v324
    %v401 = vpack.c.b16 %v329, %v325
    %v402 = vpack.c.b16 %v330, %v326
    %v403 = vpack.c.b16 %v335, %v331
    %v404 = vpack.c.b16 %v336, %v332
    %v405 = vpack.c.b16 %v337, %v333
    %v406 = vpack.c.b16 %v338, %v334
    %v407 = vpack.c.b16 %v343, %v339
    %v408 = vpack.c.b16 %v344, %v340
    %v409 = vpack.c.b16 %v345, %v341
    %v410 = vpack.c.b16 %v346, %v342
    %v411 = vpack.c.b16 %v351, %v347
    %v412 = vpack.c.b16 %v352, %v348
    %v413 = vpack.c.b16 %v353, %v349
    %v414 = vpack.c.b16 %v354, %v350
    %v415 = vpack.c.b16 %v359, %v355
    %v416 = vpack.c.b16 %v360, %v356
    %v417 = vpack.c.b16 %v361, %v357
    %v418 = vpack.c.b16 %v362, %v358
    %v419 = vpack.c.b16 %v367, %v363
    %v420 = vpack.c.b16 %v368, %v364
    %v421 = vpack.c.b16 %v369, %v365
    %v422 = vpack.c.b16 %v370, %v366
    %v423 = vpack.c.b16 %v371, %v371
    %v424 = vpack.c.b16 %v372, %v372
    %v425 = vpack.c.b16 %v373, %v373
    %v426 = vpack.c.b16 %v374, %v374
    %vm475 = vcmask 556032
    %v477 = vsel %vm475, %v224, 0
    %vm479 = vcmask 1041408
    %v481 = vsel %vm479, %v423, 0
    %v484 = vsel %vm479, %v424, 0
    %v487 = vsel %vm479, %v425, 0
    %v490 = vsel %vm479, %v426, 0
    %492 = vmatpush.bf16.msra.mxu0 %v403
    %493 = vmatpush.bf16.msra.mxu0 %v399
    %494 = vmatpush.bf16.msra.mxu0 %v395
    %495 = vmatpush.bf16.msra.mxu0 %v391
    %496 = vmatpush.bf16.msra.mxu0 %v387
    %497 = vmatpush.bf16.msra.mxu0 %v383
    %498 = vmatpush.bf16.msra.mxu0 %v379
    %499 = vmatpush.bf16.msra.mxu0 %v375
    %500 = vmatmul.bf16.gmra.mxu0 %v223
    %v501 = vpop.f32.mrf.mxu0
    %v502 = vadd.f32 0.0, %v501
    %v503 = vpop.f32.mrf.mxu0
    %504 = vdwg.mxu0
    %505 = vmatpush.bf16.msra.mxu0 0
    %506 = vmatpush.bf16.msra.mxu0 0
    %507 = vmatpush.bf16.msra.mxu0 0
    %508 = vmatpush.bf16.msra.mxu0 %v481
    %509 = vmatpush.bf16.msra.mxu0 %v419
    %510 = vmatpush.bf16.msra.mxu0 %v415
    %511 = vmatpush.bf16.msra.mxu0 %v411
    %512 = vmatpush.bf16.msra.mxu0 %v407
    %513 = vmatmul.bf16.gmra.mxu0 %v477
    %v514 = vpop.f32.mrf.mxu0
    %v515 = vadd.f32 %v502, %v514
    %v516 = vpop.f32.mrf.mxu0
    %517 = vdwg.mxu0
    %518 = vmatpush.bf16.msra.mxu0 %v404
    %519 = vmatpush.bf16.msra.mxu0 %v400
    %520 = vmatpush.bf16.msra.mxu0 %v396
    %521 = vmatpush.bf16.msra.mxu0 %v392
    %522 = vmatpush.bf16.msra.mxu0 %v388
    %523 = vmatpush.bf16.msra.mxu0 %v384
    %524 = vmatpush.bf16.msra.mxu0 %v380
    %525 = vmatpush.bf16.msra.mxu0 %v376
    %526 = vmatmul.bf16.gmra.mxu0 %v223
    %v527 = vpop.f32.mrf.mxu0
    %v528 = vadd.f32 0.0, %v527
    %v529 = vpop.f32.mrf.mxu0
    %530 = vdwg.mxu0
    %531 = vmatpush.bf16.msra.mxu0 0
    %532 = vmatpush.bf16.msra.mxu0 0
    %533 = vmatpush.bf16.msra.mxu0 0
    %534 = vmatpush.bf16.msra.mxu0 %v484
    %535 = vmatpush.bf16.msra.mxu0 %v420
    %536 = vmatpush.bf16.msra.mxu0 %v416
    %537 = vmatpush.bf16.msra.mxu0 %v412
    %538 = vmatpush.bf16.msra.mxu0 %v408
    %539 = vmatmul.bf16.gmra.mxu0 %v477
    %v540 = vpop.f32.mrf.mxu0
    %v541 = vadd.f32 %v528, %v540
    %v542 = vpop.f32.mrf.mxu0
    %543 = vdwg.mxu0
    %544 = vmatpush.bf16.msra.mxu0 %v405
    %545 = vmatpush.bf16.msra.mxu0 %v401
    %546 = vmatpush.bf16.msra.mxu0 %v397
    %547 = vmatpush.bf16.msra.mxu0 %v393
    %548 = vmatpush.bf16.msra.mxu0 %v389
    %549 = vmatpush.bf16.msra.mxu0 %v385
    %550 = vmatpush.bf16.msra.mxu0 %v381
    %551 = vmatpush.bf16.msra.mxu0 %v377
    %552 = vmatmul.bf16.gmra.mxu0 %v223
    %v553 = vpop.f32.mrf.mxu0
    %v554 = vadd.f32 0.0, %v553
    %v555 = vpop.f32.mrf.mxu0
    %556 = vdwg.mxu0
    %557 = vmatpush.bf16.msra.mxu0 0
    %558 = vmatpush.bf16.msra.mxu0 0
    %559 = vmatpush.bf16.msra.mxu0 0
    %560 = vmatpush.bf16.msra.mxu0 %v487
    %561 = vmatpush.bf16.msra.mxu0 %v421
    %562 = vmatpush.bf16.msra.mxu0 %v417
    %563 = vmatpush.bf16.msra.mxu0 %v413
    %564 = vmatpush.bf16.msra.mxu0 %v409
    %565 = vmatmul.bf16.gmra.mxu0 %v477
    %v566 = vpop.f32.mrf.mxu0
    %v567 = vadd.f32 %v554, %v566
    %v568 = vpop.f32.mrf.mxu0
    %569 = vdwg.mxu0
    %570 = vmatpush.bf16.msra.mxu0 %v406
    %571 = vmatpush.bf16.msra.mxu0 %v402
    %572 = vmatpush.bf16.msra.mxu0 %v398
    %573 = vmatpush.bf16.msra.mxu0 %v394
    %574 = vmatpush.bf16.msra.mxu0 %v390
    %575 = vmatpush.bf16.msra.mxu0 %v386
    %576 = vmatpush.bf16.msra.mxu0 %v382
    %577 = vmatpush.bf16.msra.mxu0 %v378
    %578 = vmatmul.bf16.gmra.mxu0 %v223
    %v579 = vpop.f32.mrf.mxu0
    %v580 = vadd.f32 0.0, %v579
    %v581 = vpop.f32.mrf.mxu0
    %582 = vdwg.mxu0
    %583 = vmatpush.bf16.msra.mxu0 0
    %584 = vmatpush.bf16.msra.mxu0 0
    %585 = vmatpush.bf16.msra.mxu0 0
    %586 = vmatpush.bf16.msra.mxu0 %v490
    %587 = vmatpush.bf16.msra.mxu0 %v422
    %588 = vmatpush.bf16.msra.mxu0 %v418
    %589 = vmatpush.bf16.msra.mxu0 %v414
    %590 = vmatpush.bf16.msra.mxu0 %v410
    %591 = vmatmul.bf16.gmra.mxu0 %v477
    %v592 = vpop.f32.mrf.mxu0
    %v593 = vadd.f32 %v580, %v592
    %v594 = vpop.f32.mrf.mxu0
    %595 = vdwg.mxu0
    %597 = vrot.lane.b32.xlu0 %v515, 79
    %v598 = vpop.permute.xlu0 %597
    %601 = vrot.lane.b32.xlu0 %v515, 30
    %v602 = vpop.permute.xlu0 %601
    %603 = vrot.lane.b32.xlu0 %v541, 30
    %v604 = vpop.permute.xlu0 %603
    %vm605 = vcmask 244736
    %v606 = vsel %vm605, %v602, %v604
    %608 = vrot.lane.b32.xlu0 %v541, 109
    %v609 = vpop.permute.xlu0 %608
    %611 = vrot.lane.b32.xlu0 %v541, 60
    %v612 = vpop.permute.xlu0 %611
    %615 = vrot.lane.b32.xlu0 %v541, 11
    %v616 = vpop.permute.xlu0 %615
    %617 = vrot.lane.b32.xlu0 %v567, 11
    %v618 = vpop.permute.xlu0 %617
    %vm619 = vcmask 89088
    %v620 = vsel %vm619, %v616, %v618
    %622 = vrot.lane.b32.xlu0 %v567, 90
    %v623 = vpop.permute.xlu0 %622
    %626 = vrot.lane.b32.xlu0 %v567, 41
    %v627 = vpop.permute.xlu0 %626
    %628 = vrot.lane.b32.xlu0 %v593, 41
    %v629 = vpop.permute.xlu0 %628
    %vm630 = vcmask 334848
    %v631 = vsel %vm630, %v627, %v629
    %633 = vrot.lane.b32.xlu0 %v593, 120
    %v634 = vpop.permute.xlu0 %633
    %v636 = vpack.c.bf16 %v171, %v171
    %v637 = vpack.c.bf16 %v172, %v172
    %641 = vrot.lane.b32.xlu0 %v224, 60
    %v642 = vpop.permute.xlu0 %641
    %643 = vrot.lane.b32.xlu0 %v636, 60
    %v644 = vpop.permute.xlu0 %643
    %645 = vrot.lane.b32.xlu0 %v637, 60
    %v646 = vpop.permute.xlu0 %645
    %vm647 = vcmask 490496
    %v648 = vsel %vm647, %v642, %v644
    %v649 = vsel %vm647, %v644, %v646
    %v652 = vsel %vm475, %v649, 0
    %654 = vmatpush.bf16.msra.mxu0 %v403
    %655 = vmatpush.bf16.msra.mxu0 %v399
    %656 = vmatpush.bf16.msra.mxu0 %v395
    %657 = vmatpush.bf16.msra.mxu0 %v391
    %658 = vmatpush.bf16.msra.mxu0 %v387
    %659 = vmatpush.bf16.msra.mxu0 %v383
    %660 = vmatpush.bf16.msra.mxu0 %v379
    %661 = vmatpush.bf16.msra.mxu0 %v375
    %662 = vmatmul.bf16.gmra.mxu0 %v648
    %v663 = vpop.f32.mrf.mxu0
    %v664 = vadd.f32 0.0, %v663
    %v665 = vpop.f32.mrf.mxu0
    %666 = vdwg.mxu0
    %667 = vmatpush.bf16.msra.mxu0 0
    %668 = vmatpush.bf16.msra.mxu0 0
    %669 = vmatpush.bf16.msra.mxu0 0
    %670 = vmatpush.bf16.msra.mxu0 %v481
    %671 = vmatpush.bf16.msra.mxu0 %v419
    %672 = vmatpush.bf16.msra.mxu0 %v415
    %673 = vmatpush.bf16.msra.mxu0 %v411
    %674 = vmatpush.bf16.msra.mxu0 %v407
    %675 = vmatmul.bf16.gmra.mxu0 %v652
    %v676 = vpop.f32.mrf.mxu0
    %v677 = vadd.f32 %v664, %v676
    %v678 = vpop.f32.mrf.mxu0
    %679 = vdwg.mxu0
    %680 = vmatpush.bf16.msra.mxu0 %v404
    %681 = vmatpush.bf16.msra.mxu0 %v400
    %682 = vmatpush.bf16.msra.mxu0 %v396
    %683 = vmatpush.bf16.msra.mxu0 %v392
    %684 = vmatpush.bf16.msra.mxu0 %v388
    %685 = vmatpush.bf16.msra.mxu0 %v384
    %686 = vmatpush.bf16.msra.mxu0 %v380
    %687 = vmatpush.bf16.msra.mxu0 %v376
    %688 = vmatmul.bf16.gmra.mxu0 %v648
    %v689 = vpop.f32.mrf.mxu0
    %v690 = vadd.f32 0.0, %v689
    %v691 = vpop.f32.mrf.mxu0
    %692 = vdwg.mxu0
    %693 = vmatpush.bf16.msra.mxu0 0
    %694 = vmatpush.bf16.msra.mxu0 0
    %695 = vmatpush.bf16.msra.mxu0 0
    %696 = vmatpush.bf16.msra.mxu0 %v484
    %697 = vmatpush.bf16.msra.mxu0 %v420
    %698 = vmatpush.bf16.msra.mxu0 %v416
    %699 = vmatpush.bf16.msra.mxu0 %v412
    %700 = vmatpush.bf16.msra.mxu0 %v408
    %701 = vmatmul.bf16.gmra.mxu0 %v652
    %v702 = vpop.f32.mrf.mxu0
    %v703 = vadd.f32 %v690, %v702
    %v704 = vpop.f32.mrf.mxu0
    %705 = vdwg.mxu0
    %706 = vmatpush.bf16.msra.mxu0 %v405
    %707 = vmatpush.bf16.msra.mxu0 %v401
    %708 = vmatpush.bf16.msra.mxu0 %v397
    %709 = vmatpush.bf16.msra.mxu0 %v393
    %710 = vmatpush.bf16.msra.mxu0 %v389
    %711 = vmatpush.bf16.msra.mxu0 %v385
    %712 = vmatpush.bf16.msra.mxu0 %v381
    %713 = vmatpush.bf16.msra.mxu0 %v377
    %714 = vmatmul.bf16.gmra.mxu0 %v648
    %v715 = vpop.f32.mrf.mxu0
    %v716 = vadd.f32 0.0, %v715
    %v717 = vpop.f32.mrf.mxu0
    %718 = vdwg.mxu0
    %719 = vmatpush.bf16.msra.mxu0 0
    %720 = vmatpush.bf16.msra.mxu0 0
    %721 = vmatpush.bf16.msra.mxu0 0
    %722 = vmatpush.bf16.msra.mxu0 %v487
    %723 = vmatpush.bf16.msra.mxu0 %v421
    %724 = vmatpush.bf16.msra.mxu0 %v417
    %725 = vmatpush.bf16.msra.mxu0 %v413
    %726 = vmatpush.bf16.msra.mxu0 %v409
    %727 = vmatmul.bf16.gmra.mxu0 %v652
    %v728 = vpop.f32.mrf.mxu0
    %v729 = vadd.f32 %v716, %v728
    %v730 = vpop.f32.mrf.mxu0
    %731 = vdwg.mxu0
    %732 = vmatpush.bf16.msra.mxu0 %v406
    %733 = vmatpush.bf16.msra.mxu0 %v402
    %734 = vmatpush.bf16.msra.mxu0 %v398
    %735 = vmatpush.bf16.msra.mxu0 %v394
    %736 = vmatpush.bf16.msra.mxu0 %v390
    %737 = vmatpush.bf16.msra.mxu0 %v386
    %738 = vmatpush.bf16.msra.mxu0 %v382
    %739 = vmatpush.bf16.msra.mxu0 %v378
    %740 = vmatmul.bf16.gmra.mxu0 %v648
    %v741 = vpop.f32.mrf.mxu0
    %v742 = vadd.f32 0.0, %v741
    %v743 = vpop.f32.mrf.mxu0
    %744 = vdwg.mxu0
    %745 = vmatpush.bf16.msra.mxu0 0
    %746 = vmatpush.bf16.msra.mxu0 0
    %747 = vmatpush.bf16.msra.mxu0 0
    %748 = vmatpush.bf16.msra.mxu0 %v490
    %749 = vmatpush.bf16.msra.mxu0 %v422
    %750 = vmatpush.bf16.msra.mxu0 %v418
    %751 = vmatpush.bf16.msra.mxu0 %v414
    %752 = vmatpush.bf16.msra.mxu0 %v410
    %753 = vmatmul.bf16.gmra.mxu0 %v652
    %v754 = vpop.f32.mrf.mxu0
    %v755 = vadd.f32 %v742, %v754
    %v756 = vpop.f32.mrf.mxu0
    %757 = vdwg.mxu0
    %759 = vrot.lane.b32.xlu0 %v677, 79
    %v760 = vpop.permute.xlu0 %759
    %762 = vrot.lane.b32.xlu0 %v677, 30
    %v763 = vpop.permute.xlu0 %762
    %764 = vrot.lane.b32.xlu0 %v703, 30
    %v765 = vpop.permute.xlu0 %764
    %v766 = vsel %vm605, %v763, %v765
    %767 = vrot.lane.b32.xlu0 %v703, 109
    %v768 = vpop.permute.xlu0 %767
    %769 = vrot.lane.b32.xlu0 %v703, 60
    %v770 = vpop.permute.xlu0 %769
    %772 = vrot.lane.b32.xlu0 %v703, 11
    %v773 = vpop.permute.xlu0 %772
    %774 = vrot.lane.b32.xlu0 %v729, 11
    %v775 = vpop.permute.xlu0 %774
    %v776 = vsel %vm619, %v773, %v775
    %777 = vrot.lane.b32.xlu0 %v729, 90
    %v778 = vpop.permute.xlu0 %777
    %780 = vrot.lane.b32.xlu0 %v729, 41
    %v781 = vpop.permute.xlu0 %780
    %782 = vrot.lane.b32.xlu0 %v755, 41
    %v783 = vpop.permute.xlu0 %782
    %v784 = vsel %vm630, %v781, %v783
    %785 = vrot.lane.b32.xlu0 %v755, 120
    %v786 = vpop.permute.xlu0 %785
    %787 = vrot.lane.b32.xlu0 %v677, 49
    %v788 = vpop.permute.xlu0 %787
    %789 = vrot.lane.b32.xlu0 %v760, 49
    %v790 = vpop.permute.xlu0 %789
    %791 = vrot.lane.b32.xlu0 %v766, 49
    %v792 = vpop.permute.xlu0 %791
    %793 = vrot.lane.b32.xlu0 %v768, 49
    %v794 = vpop.permute.xlu0 %793
    %795 = vrot.lane.b32.xlu0 %v770, 49
    %v796 = vpop.permute.xlu0 %795
    %797 = vrot.lane.b32.xlu0 %v776, 49
    %v798 = vpop.permute.xlu0 %797
    %799 = vrot.lane.b32.xlu0 %v778, 49
    %v800 = vpop.permute.xlu0 %799
    %801 = vrot.lane.b32.xlu0 %v784, 49
    %v802 = vpop.permute.xlu0 %801
    %803 = vrot.lane.b32.xlu0 %v786, 49
    %v804 = vpop.permute.xlu0 %803
    %vm814 = vcmask 400384
    %v815 = vsel %vm814, %v515, %v788
    %v816 = vsel %vm814, %v598, %v790
    %v817 = vsel %vm814, %v606, %v792
    %v818 = vsel %vm814, %v609, %v794
    %v819 = vsel %vm814, %v612, %v796
    %v820 = vsel %vm814, %v620, %v798
    %v821 = vsel %vm814, %v623, %v800
    %v822 = vsel %vm814, %v631, %v802
    %v823 = vsel %vm814, %v634, %v804
    %v824 = vld [vmem:[%s5] sm:$0xff]
    %v825 = vld [vmem:[%s5 + $0x8] sm:$0xff]
    %v826 = vld [vmem:[%s6] sm:$0xff]
    %v827 = vld [vmem:[%s6 + $0x8] sm:$0xff]
    %829 = vset.pattern.permute.xlu0 0
    %830 = vperm.xlu0 %829, %v826
    %v831 = vpop.permute.xlu0 %830
    %834 = vset.pattern.permute.xlu0 0
    %835 = vperm.xlu0 %834, %v827
    %v836 = vpop.permute.xlu0 %835
    %vm838 = vcmask 588800
    %v840 = vsel %vm838, %v824, 0
    %v843 = vsel %vm838, %v825, 0
    %845 = vmatpush.msra.mxu0 0.0
    %846 = vmatpush.msra.mxu0 0.0
    %847 = vmatpush.msra.mxu0 0.0
    %848 = vmatpush.msra.mxu0 0.0
    %849 = vmatpush.msra.mxu0 0.0
    %850 = vmatpush.msra.mxu0 0.0
    %851 = vmatpush.msra.mxu0 0.0
    %852 = vmatpush.msra.mxu0 %v823
    %853 = vmatpush.msra.mxu0 %v822
    %854 = vmatpush.msra.mxu0 %v821
    %855 = vmatpush.msra.mxu0 %v820
    %856 = vmatpush.msra.mxu0 %v819
    %857 = vmatpush.msra.mxu0 %v818
    %858 = vmatpush.msra.mxu0 %v817
    %859 = vmatpush.msra.mxu0 %v816
    %860 = vmatpush.msra.mxu0 %v815
    %861 = vmatmul.f32.gmra.mxu0 %v840
    %v862 = vpop.f32.mrf.mxu0
    %v863 = vadd.f32 %v831, %v862
    %864 = vmatmul.f32.gmra.mxu0 %v843
    %v865 = vpop.f32.mrf.mxu0
    %v866 = vadd.f32 %v836, %v865
    %867 = vdwg.mxu0
    %vm868 = vcmask 801792
    %v869 = vsel %vm868, %v863, 0.0
    %870 = vadd.xlane.f32.xlu0 %v869
    %v871 = vpop.xlane.xlu0 %870
    %v872 = vsel %vm868, %v866, 0.0
    %873 = vadd.xlane.f32.xlu0 %v872
    %v874 = vpop.xlane.xlu0 %873
    %v875 = vrcp.pop 98.0
    %v876 = vmul.f32 98.0, %v875
    %v877 = vsub.f32 1.0, %v876
    %v878 = vmul.f32 %v875, %v877
    %v879 = vadd.f32 %v875, %v878
    %vm880 = vweird.f32 %v875
    %v881 = vsel %vm880, %v875, %v879
    %v882 = vmul.f32 %v871, %v881
    %v883 = vmul.f32 %v874, %v881
    %v884 = vsub.f32 %v863, %v882
    %v885 = vsub.f32 %v866, %v883
    %v886 = vmul.f32 %v884, %v884
    %v887 = vmul.f32 %v885, %v885
    %v888 = vsel %vm868, %v886, 0.0
    %889 = vadd.xlane.f32.xlu0 %v888
    %v890 = vpop.xlane.xlu0 %889
    %v891 = vsel %vm868, %v887, 0.0
    %892 = vadd.xlane.f32.xlu0 %v891
    %v893 = vpop.xlane.xlu0 %892
    %v894 = vmul.f32 %v890, %v881
    %v895 = vmul.f32 %v893, %v881
    %v896 = vld [vmem:[%s7] sm:$0xff]
    %v897 = vld [vmem:[%s7 + $0x8] sm:$0xff]
    %v898 = vadd.f32 %v894, 1e-05
    %v899 = vadd.f32 %v895, 1e-05
    %v900 = vrsqrt.pop %v898
    %v901 = vmul.f32 %v900, %v898
    %v902 = vmul.f32 %v901, %v900
    %v903 = vmul.f32 0.5, %v902
    %v904 = vsub.f32 1.5, %v903
    %v905 = vmul.f32 %v900, %v904
    %vm906 = vweird.f32 %v898
    %vm907 = vweird.f32 %v900
    %vm908 = vmor %vm906, %vm907
    %v909 = vsel %vm908, %v900, %v905
    %v910 = vrsqrt.pop %v899
    %v911 = vmul.f32 %v910, %v899
    %v912 = vmul.f32 %v911, %v910
    %v913 = vmul.f32 0.5, %v912
    %v914 = vsub.f32 1.5, %v913
    %v915 = vmul.f32 %v910, %v914
    %vm916 = vweird.f32 %v899
    %vm917 = vweird.f32 %v910
    %vm918 = vmor %vm916, %vm917
    %v919 = vsel %vm918, %v910, %v915
    %v920 = vmul.f32 %v896, %v909
    %v921 = vmul.f32 %v897, %v919
    %v922 = vld [vmem:[%s8] sm:$0xff]
    %v923 = vld [vmem:[%s8 + $0x8] sm:$0xff]
    %v924 = vmul.f32 %v882, %v920
    %v925 = vmul.f32 %v883, %v921
    %v926 = vsub.f32 %v922, %v924
    %v927 = vsub.f32 %v923, %v925
    %929 = vset.pattern.permute.xlu0 0
    %930 = vperm.xlu0 %929, %v920
    %v931 = vpop.permute.xlu0 %930
    %934 = vset.pattern.permute.xlu0 0
    %935 = vperm.xlu0 %934, %v921
    %v936 = vpop.permute.xlu0 %935
    %v938 = vmul.f32 %v863, %v931
    %v939 = vmul.f32 %v866, %v936
    %941 = vset.pattern.permute.xlu0 0
    %942 = vperm.xlu0 %941, %v926
    %v943 = vpop.permute.xlu0 %942
    %946 = vset.pattern.permute.xlu0 0
    %947 = vperm.xlu0 %946, %v927
    %v948 = vpop.permute.xlu0 %947
    %v950 = vadd.f32 %v938, %v943
    %v951 = vadd.f32 %v939, %v948
    %v952 = vmax.f32 %v950, 0.0
    %v953 = vmax.f32 %v951, 0.0
    %v954 = vld [vmem:[%s2] sm:$0xf]
    %v955 = vld [vmem:[%s2 + $0x4] sm:$0xf]
    %v956 = vld [vmem:[%s2 + $0x8] sm:$0xf]
    %v957 = vld [vmem:[%s2 + $0xc] sm:$0xf]
    %v958 = vld [vmem:[%s2 + $0x10] sm:$0xf]
    %v959 = vld [vmem:[%s2 + $0x14] sm:$0xf]
    %v960 = vld [vmem:[%s2 + $0x18] sm:$0x1]
    %v961 = vpack.c.bf16 %v953, %v952
    %v969 = vunpack.c.l.b16 %v954
    %v970 = vunpack.c.l.b16 %v955
    %v971 = vunpack.c.l.b16 %v956
    %v972 = vunpack.c.l.b16 %v957
    %v973 = vunpack.c.l.b16 %v958
    %v974 = vunpack.c.l.b16 %v959
    %v975 = vunpack.c.l.b16 %v960
    %v976 = vpack.c.b16 %v970, %v969
    %v977 = vpack.c.b16 %v972, %v971
    %v978 = vpack.c.b16 %v974, %v973
    %v979 = vpack.c.b16 %v975, %v975
    %v984 = vsel %vm814, %v961, 0
    %v986 = vsel 0, 4294967295, 65535
    %v987 = vsel %vm76, %v986, 0
    %v989 = vand.u32 %v979, %v987
    %991 = vmatpush.bf16.msra.mxu0 0
    %992 = vmatpush.bf16.msra.mxu0 0
    %993 = vmatpush.bf16.msra.mxu0 0
    %994 = vmatpush.bf16.msra.mxu0 0
    %995 = vmatpush.bf16.msra.mxu0 %v989
    %996 = vmatpush.bf16.msra.mxu0 %v978
    %997 = vmatpush.bf16.msra.mxu0 %v977
    %998 = vmatpush.bf16.msra.mxu0 %v976
    %999 = vmatmul.bf16.gmra.mxu0 %v984
    %v1000 = vpop.f32.mrf.mxu0
    %v1001 = vadd.f32 0.0, %v1000
    %v1002 = vpop.f32.mrf.mxu0
    %v1003 = vadd.f32 0.0, %v1002
    %1004 = vdwg.mxu0
    %1007 = vrot.lane.b32.xlu0 %v1001, 119
    %v1008 = vpop.permute.xlu0 %1007
    %1009 = vrot.lane.b32.xlu0 %v1003, 119
    %v1010 = vpop.permute.xlu0 %1009
    %1013 = vrot.lane.b32.xlu0 %v1001, 110
    %v1014 = vpop.permute.xlu0 %1013
    %1015 = vrot.lane.b32.xlu0 %v1003, 110
    %v1016 = vpop.permute.xlu0 %1015
    %1019 = vrot.lane.b32.xlu0 %v1001, 101
    %v1020 = vpop.permute.xlu0 %1019
    %1021 = vrot.lane.b32.xlu0 %v1003, 101
    %v1022 = vpop.permute.xlu0 %1021
    %1025 = vrot.lane.b32.xlu0 %v1001, 92
    %v1026 = vpop.permute.xlu0 %1025
    %1027 = vrot.lane.b32.xlu0 %v1003, 92
    %v1028 = vpop.permute.xlu0 %1027
    %1031 = vrot.lane.b32.xlu0 %v1001, 83
    %v1032 = vpop.permute.xlu0 %1031
    %1033 = vrot.lane.b32.xlu0 %v1003, 83
    %v1034 = vpop.permute.xlu0 %1033
    %1037 = vrot.lane.b32.xlu0 %v1001, 74
    %v1038 = vpop.permute.xlu0 %1037
    %1039 = vrot.lane.b32.xlu0 %v1003, 74
    %v1040 = vpop.permute.xlu0 %1039
    %1043 = vrot.lane.b32.xlu0 %v1001, 65
    %v1044 = vpop.permute.xlu0 %1043
    %1045 = vrot.lane.b32.xlu0 %v1003, 65
    %v1046 = vpop.permute.xlu0 %1045
    %1049 = vrot.lane.b32.xlu0 %v1001, 56
    %v1050 = vpop.permute.xlu0 %1049
    %1051 = vrot.lane.b32.xlu0 %v1003, 56
    %v1052 = vpop.permute.xlu0 %1051
    %1056 = vrot.lane.b32.xlu0 %v961, 79
    %v1057 = vpop.permute.xlu0 %1056
    %v1059 = vsel %vm814, %v1057, 0
    %1061 = vmatpush.bf16.msra.mxu0 0
    %1062 = vmatpush.bf16.msra.mxu0 0
    %1063 = vmatpush.bf16.msra.mxu0 0
    %1064 = vmatpush.bf16.msra.mxu0 0
    %1065 = vmatpush.bf16.msra.mxu0 %v989
    %1066 = vmatpush.bf16.msra.mxu0 %v978
    %1067 = vmatpush.bf16.msra.mxu0 %v977
    %1068 = vmatpush.bf16.msra.mxu0 %v976
    %1069 = vmatmul.bf16.gmra.mxu0 %v1059
    %v1070 = vpop.f32.mrf.mxu0
    %v1071 = vadd.f32 0.0, %v1070
    %v1072 = vpop.f32.mrf.mxu0
    %v1073 = vadd.f32 0.0, %v1072
    %1074 = vdwg.mxu0
    %1077 = vrot.lane.b32.xlu0 %v1071, 119
    %v1078 = vpop.permute.xlu0 %1077
    %1079 = vrot.lane.b32.xlu0 %v1073, 119
    %v1080 = vpop.permute.xlu0 %1079
    %1081 = vrot.lane.b32.xlu0 %v1071, 110
    %v1082 = vpop.permute.xlu0 %1081
    %1083 = vrot.lane.b32.xlu0 %v1073, 110
    %v1084 = vpop.permute.xlu0 %1083
    %1085 = vrot.lane.b32.xlu0 %v1071, 101
    %v1086 = vpop.permute.xlu0 %1085
    %1087 = vrot.lane.b32.xlu0 %v1073, 101
    %v1088 = vpop.permute.xlu0 %1087
    %1089 = vrot.lane.b32.xlu0 %v1071, 92
    %v1090 = vpop.permute.xlu0 %1089
    %1091 = vrot.lane.b32.xlu0 %v1073, 92
    %v1092 = vpop.permute.xlu0 %1091
    %1093 = vrot.lane.b32.xlu0 %v1071, 83
    %v1094 = vpop.permute.xlu0 %1093
    %1095 = vrot.lane.b32.xlu0 %v1073, 83
    %v1096 = vpop.permute.xlu0 %1095
    %1097 = vrot.lane.b32.xlu0 %v1071, 74
    %v1098 = vpop.permute.xlu0 %1097
    %1099 = vrot.lane.b32.xlu0 %v1073, 74
    %v1100 = vpop.permute.xlu0 %1099
    %1101 = vrot.lane.b32.xlu0 %v1071, 65
    %v1102 = vpop.permute.xlu0 %1101
    %1103 = vrot.lane.b32.xlu0 %v1073, 65
    %v1104 = vpop.permute.xlu0 %1103
    %1105 = vrot.lane.b32.xlu0 %v1071, 56
    %v1106 = vpop.permute.xlu0 %1105
    %1107 = vrot.lane.b32.xlu0 %v1073, 56
    %v1108 = vpop.permute.xlu0 %1107
    %1109 = vrot.lane.b32.xlu0 %v1071, 9
    %v1110 = vpop.permute.xlu0 %1109
    %1111 = vrot.lane.b32.xlu0 %v1073, 9
    %v1112 = vpop.permute.xlu0 %1111
    %1113 = vrot.lane.b32.xlu0 %v1078, 9
    %v1114 = vpop.permute.xlu0 %1113
    %1115 = vrot.lane.b32.xlu0 %v1080, 9
    %v1116 = vpop.permute.xlu0 %1115
    %1117 = vrot.lane.b32.xlu0 %v1082, 9
    %v1118 = vpop.permute.xlu0 %1117
    %1119 = vrot.lane.b32.xlu0 %v1084, 9
    %v1120 = vpop.permute.xlu0 %1119
    %1121 = vrot.lane.b32.xlu0 %v1086, 9
    %v1122 = vpop.permute.xlu0 %1121
    %1123 = vrot.lane.b32.xlu0 %v1088, 9
    %v1124 = vpop.permute.xlu0 %1123
    %1125 = vrot.lane.b32.xlu0 %v1090, 9
    %v1126 = vpop.permute.xlu0 %1125
    %1127 = vrot.lane.b32.xlu0 %v1092, 9
    %v1128 = vpop.permute.xlu0 %1127
    %1129 = vrot.lane.b32.xlu0 %v1094, 9
    %v1130 = vpop.permute.xlu0 %1129
    %1131 = vrot.lane.b32.xlu0 %v1096, 9
    %v1132 = vpop.permute.xlu0 %1131
    %1133 = vrot.lane.b32.xlu0 %v1098, 9
    %v1134 = vpop.permute.xlu0 %1133
    %1135 = vrot.lane.b32.xlu0 %v1100, 9
    %v1136 = vpop.permute.xlu0 %1135
    %1137 = vrot.lane.b32.xlu0 %v1102, 9
    %v1138 = vpop.permute.xlu0 %1137
    %1139 = vrot.lane.b32.xlu0 %v1104, 9
    %v1140 = vpop.permute.xlu0 %1139
    %1141 = vrot.lane.b32.xlu0 %v1106, 9
    %v1142 = vpop.permute.xlu0 %1141
    %1143 = vrot.lane.b32.xlu0 %v1108, 9
    %v1144 = vpop.permute.xlu0 %1143
    %v1163 = vsel %vm72, %v1001, %v1110
    %v1164 = vsel %vm72, %v1003, %v1112
    %v1165 = vsel %vm72, %v1008, %v1114
    %v1166 = vsel %vm72, %v1010, %v1116
    %v1167 = vsel %vm72, %v1014, %v1118
    %v1168 = vsel %vm72, %v1016, %v1120
    %v1169 = vsel %vm72, %v1020, %v1122
    %v1170 = vsel %vm72, %v1022, %v1124
    %v1171 = vsel %vm72, %v1026, %v1126
    %v1172 = vsel %vm72, %v1028, %v1128
    %v1173 = vsel %vm72, %v1032, %v1130
    %v1174 = vsel %vm72, %v1034, %v1132
    %v1175 = vsel %vm72, %v1038, %v1134
    %v1176 = vsel %vm72, %v1040, %v1136
    %v1177 = vsel %vm72, %v1044, %v1138
    %v1178 = vsel %vm72, %v1046, %v1140
    %v1179 = vsel %vm72, %v1050, %v1142
    %v1180 = vsel %vm72, %v1052, %v1144
    %v1181 = vld [vmem:[%s9] sm:$0xff]
    %v1182 = vld [vmem:[%s9 + $0x8] sm:$0xff]
    %v1183 = vld [vmem:[%s9 + $0x10] sm:$0xff]
    %v1184 = vld [vmem:[%s9 + $0x18] sm:$0xff]
    %v1185 = vld [vmem:[%s9 + $0x20] sm:$0xff]
    %v1186 = vld [vmem:[%s9 + $0x28] sm:$0xff]
    %v1187 = vld [vmem:[%s9 + $0x30] sm:$0xff]
    %v1188 = vld [vmem:[%s9 + $0x38] sm:$0xff]
    %v1189 = vld [vmem:[%s10] sm:$0xff]
    %v1190 = vld [vmem:[%s10 + $0x8] sm:$0xff]
    %v1191 = vld [vmem:[%s10 + $0x10] sm:$0xff]
    %v1192 = vld [vmem:[%s10 + $0x18] sm:$0xff]
    %1194 = vset.pattern.permute.xlu0 0
    %1195 = vperm.xlu0 %1194, %v1189
    %v1196 = vpop.permute.xlu0 %1195
    %1199 = vset.pattern.permute.xlu0 0
    %1200 = vperm.xlu0 %1199, %v1190
    %v1201 = vpop.permute.xlu0 %1200
    %1204 = vset.pattern.permute.xlu0 0
    %1205 = vperm.xlu0 %1204, %v1191
    %v1206 = vpop.permute.xlu0 %1205
    %1209 = vset.pattern.permute.xlu0 0
    %1210 = vperm.xlu0 %1209, %v1192
    %v1211 = vpop.permute.xlu0 %1210
    %vm1213 = vcmask 130048
    %v1215 = vsel %vm1213, %v1182, 0
    %v1218 = vsel %vm1213, %v1184, 0
    %v1221 = vsel %vm1213, %v1186, 0
    %v1224 = vsel %vm1213, %v1188, 0
    %1226 = vmatpush.msra.mxu0 %v1178
    %1227 = vmatpush.msra.mxu0 %v1177
    %1228 = vmatpush.msra.mxu0 %v1176
    %1229 = vmatpush.msra.mxu0 %v1175
    %1230 = vmatpush.msra.mxu0 %v1174
    %1231 = vmatpush.msra.mxu0 %v1173
    %1232 = vmatpush.msra.mxu0 %v1172
    %1233 = vmatpush.msra.mxu0 %v1171
    %1234 = vmatpush.msra.mxu0 %v1170
    %1235 = vmatpush.msra.mxu0 %v1169
    %1236 = vmatpush.msra.mxu0 %v1168
    %1237 = vmatpush.msra.mxu0 %v1167
    %1238 = vmatpush.msra.mxu0 %v1166
    %1239 = vmatpush.msra.mxu0 %v1165
    %1240 = vmatpush.msra.mxu0 %v1164
    %1241 = vmatpush.msra.mxu0 %v1163
    %1242 = vmatmul.f32.gmra.mxu0 %v1181
    %v1243 = vpop.f32.mrf.mxu0
    %v1244 = vadd.f32 %v1196, %v1243
    %1245 = vmatmul.f32.gmra.mxu0 %v1183
    %v1246 = vpop.f32.mrf.mxu0
    %v1247 = vadd.f32 %v1201, %v1246
    %1248 = vmatmul.f32.gmra.mxu0 %v1185
    %v1249 = vpop.f32.mrf.mxu0
    %v1250 = vadd.f32 %v1206, %v1249
    %1251 = vmatmul.f32.gmra.mxu0 %v1187
    %v1252 = vpop.f32.mrf.mxu0
    %v1253 = vadd.f32 %v1211, %v1252
    %1254 = vdwg.mxu0
    %1255 = vmatpush.msra.mxu0 0.0
    %1256 = vmatpush.msra.mxu0 0.0
    %1257 = vmatpush.msra.mxu0 0.0
    %1258 = vmatpush.msra.mxu0 0.0
    %1259 = vmatpush.msra.mxu0 0.0
    %1260 = vmatpush.msra.mxu0 0.0
    %1261 = vmatpush.msra.mxu0 0.0
    %1262 = vmatpush.msra.mxu0 0.0
    %1263 = vmatpush.msra.mxu0 0.0
    %1264 = vmatpush.msra.mxu0 0.0
    %1265 = vmatpush.msra.mxu0 0.0
    %1266 = vmatpush.msra.mxu0 0.0
    %1267 = vmatpush.msra.mxu0 0.0
    %1268 = vmatpush.msra.mxu0 0.0
    %1269 = vmatpush.msra.mxu0 %v1180
    %1270 = vmatpush.msra.mxu0 %v1179
    %1271 = vmatmul.f32.gmra.mxu0 %v1215
    %v1272 = vpop.f32.mrf.mxu0
    %v1273 = vadd.f32 %v1244, %v1272
    %1274 = vmatmul.f32.gmra.mxu0 %v1218
    %v1275 = vpop.f32.mrf.mxu0
    %v1276 = vadd.f32 %v1247, %v1275
    %1277 = vmatmul.f32.gmra.mxu0 %v1221
    %v1278 = vpop.f32.mrf.mxu0
    %v1279 = vadd.f32 %v1250, %v1278
    %1280 = vmatmul.f32.gmra.mxu0 %v1224
    %v1281 = vpop.f32.mrf.mxu0
    %v1282 = vadd.f32 %v1253, %v1281
    %1283 = vdwg.mxu0
    %v1284 = vmax.f32 %v1273, 0.0
    %v1285 = vmax.f32 %v1276, 0.0
    %v1286 = vmax.f32 %v1279, 0.0
    %v1287 = vmax.f32 %v1282, 0.0
    %1292 = vrot.lane.b32.xlu0 %v1284, 127
    %v1293 = vpop.permute.xlu0 %1292
    %1294 = vrot.lane.b32.xlu0 %v1285, 127
    %v1295 = vpop.permute.xlu0 %1294
    %1296 = vrot.lane.b32.xlu0 %v1286, 127
    %v1297 = vpop.permute.xlu0 %1296
    %1298 = vrot.lane.b32.xlu0 %v1287, 127
    %v1299 = vpop.permute.xlu0 %1298
    %1304 = vrot.lane.b32.xlu0 %v1284, 126
    %v1305 = vpop.permute.xlu0 %1304
    %1306 = vrot.lane.b32.xlu0 %v1285, 126
    %v1307 = vpop.permute.xlu0 %1306
    %1308 = vrot.lane.b32.xlu0 %v1286, 126
    %v1309 = vpop.permute.xlu0 %1308
    %1310 = vrot.lane.b32.xlu0 %v1287, 126
    %v1311 = vpop.permute.xlu0 %1310
    %1316 = vrot.lane.b32.xlu0 %v1284, 125
    %v1317 = vpop.permute.xlu0 %1316
    %1318 = vrot.lane.b32.xlu0 %v1285, 125
    %v1319 = vpop.permute.xlu0 %1318
    %1320 = vrot.lane.b32.xlu0 %v1286, 125
    %v1321 = vpop.permute.xlu0 %1320
    %1322 = vrot.lane.b32.xlu0 %v1287, 125
    %v1323 = vpop.permute.xlu0 %1322
    %1328 = vrot.lane.b32.xlu0 %v1284, 124
    %v1329 = vpop.permute.xlu0 %1328
    %1330 = vrot.lane.b32.xlu0 %v1285, 124
    %v1331 = vpop.permute.xlu0 %1330
    %1332 = vrot.lane.b32.xlu0 %v1286, 124
    %v1333 = vpop.permute.xlu0 %1332
    %1334 = vrot.lane.b32.xlu0 %v1287, 124
    %v1335 = vpop.permute.xlu0 %1334
    %1340 = vrot.lane.b32.xlu0 %v1284, 123
    %v1341 = vpop.permute.xlu0 %1340
    %1342 = vrot.lane.b32.xlu0 %v1285, 123
    %v1343 = vpop.permute.xlu0 %1342
    %1344 = vrot.lane.b32.xlu0 %v1286, 123
    %v1345 = vpop.permute.xlu0 %1344
    %1346 = vrot.lane.b32.xlu0 %v1287, 123
    %v1347 = vpop.permute.xlu0 %1346
    %1352 = vrot.lane.b32.xlu0 %v1284, 122
    %v1353 = vpop.permute.xlu0 %1352
    %1354 = vrot.lane.b32.xlu0 %v1285, 122
    %v1355 = vpop.permute.xlu0 %1354
    %1356 = vrot.lane.b32.xlu0 %v1286, 122
    %v1357 = vpop.permute.xlu0 %1356
    %1358 = vrot.lane.b32.xlu0 %v1287, 122
    %v1359 = vpop.permute.xlu0 %1358
    %1364 = vrot.lane.b32.xlu0 %v1284, 121
    %v1365 = vpop.permute.xlu0 %1364
    %1366 = vrot.lane.b32.xlu0 %v1285, 121
    %v1367 = vpop.permute.xlu0 %1366
    %1368 = vrot.lane.b32.xlu0 %v1286, 121
    %v1369 = vpop.permute.xlu0 %1368
    %1370 = vrot.lane.b32.xlu0 %v1287, 121
    %v1371 = vpop.permute.xlu0 %1370
    %1376 = vrot.lane.b32.xlu0 %v1284, 120
    %v1377 = vpop.permute.xlu0 %1376
    %1378 = vrot.lane.b32.xlu0 %v1285, 120
    %v1379 = vpop.permute.xlu0 %1378
    %1380 = vrot.lane.b32.xlu0 %v1286, 120
    %v1381 = vpop.permute.xlu0 %1380
    %1382 = vrot.lane.b32.xlu0 %v1287, 120
    %v1383 = vpop.permute.xlu0 %1382
    %1388 = vrot.lane.b32.xlu0 %v1293, 120
    %v1389 = vpop.permute.xlu0 %1388
    %1390 = vrot.lane.b32.xlu0 %v1295, 120
    %v1391 = vpop.permute.xlu0 %1390
    %1392 = vrot.lane.b32.xlu0 %v1297, 120
    %v1393 = vpop.permute.xlu0 %1392
    %1394 = vrot.lane.b32.xlu0 %v1299, 120
    %v1395 = vpop.permute.xlu0 %1394
    %1396 = vrot.lane.b32.xlu0 %v1305, 120
    %v1397 = vpop.permute.xlu0 %1396
    %1398 = vrot.lane.b32.xlu0 %v1307, 120
    %v1399 = vpop.permute.xlu0 %1398
    %1400 = vrot.lane.b32.xlu0 %v1309, 120
    %v1401 = vpop.permute.xlu0 %1400
    %1402 = vrot.lane.b32.xlu0 %v1311, 120
    %v1403 = vpop.permute.xlu0 %1402
    %1404 = vrot.lane.b32.xlu0 %v1317, 120
    %v1405 = vpop.permute.xlu0 %1404
    %1406 = vrot.lane.b32.xlu0 %v1319, 120
    %v1407 = vpop.permute.xlu0 %1406
    %1408 = vrot.lane.b32.xlu0 %v1321, 120
    %v1409 = vpop.permute.xlu0 %1408
    %1410 = vrot.lane.b32.xlu0 %v1323, 120
    %v1411 = vpop.permute.xlu0 %1410
    %1412 = vrot.lane.b32.xlu0 %v1329, 120
    %v1413 = vpop.permute.xlu0 %1412
    %1414 = vrot.lane.b32.xlu0 %v1331, 120
    %v1415 = vpop.permute.xlu0 %1414
    %1416 = vrot.lane.b32.xlu0 %v1333, 120
    %v1417 = vpop.permute.xlu0 %1416
    %1418 = vrot.lane.b32.xlu0 %v1335, 120
    %v1419 = vpop.permute.xlu0 %1418
    %1420 = vrot.lane.b32.xlu0 %v1341, 120
    %v1421 = vpop.permute.xlu0 %1420
    %1422 = vrot.lane.b32.xlu0 %v1343, 120
    %v1423 = vpop.permute.xlu0 %1422
    %1424 = vrot.lane.b32.xlu0 %v1345, 120
    %v1425 = vpop.permute.xlu0 %1424
    %1426 = vrot.lane.b32.xlu0 %v1347, 120
    %v1427 = vpop.permute.xlu0 %1426
    %1428 = vrot.lane.b32.xlu0 %v1353, 120
    %v1429 = vpop.permute.xlu0 %1428
    %1430 = vrot.lane.b32.xlu0 %v1355, 120
    %v1431 = vpop.permute.xlu0 %1430
    %1432 = vrot.lane.b32.xlu0 %v1357, 120
    %v1433 = vpop.permute.xlu0 %1432
    %1434 = vrot.lane.b32.xlu0 %v1359, 120
    %v1435 = vpop.permute.xlu0 %1434
    %1436 = vrot.lane.b32.xlu0 %v1365, 120
    %v1437 = vpop.permute.xlu0 %1436
    %1438 = vrot.lane.b32.xlu0 %v1367, 120
    %v1439 = vpop.permute.xlu0 %1438
    %1440 = vrot.lane.b32.xlu0 %v1369, 120
    %v1441 = vpop.permute.xlu0 %1440
    %1442 = vrot.lane.b32.xlu0 %v1371, 120
    %v1443 = vpop.permute.xlu0 %1442
    %1444 = vrot.lane.b32.xlu0 %v1377, 120
    %v1445 = vpop.permute.xlu0 %1444
    %1446 = vrot.lane.b32.xlu0 %v1379, 120
    %v1447 = vpop.permute.xlu0 %1446
    %1448 = vrot.lane.b32.xlu0 %v1381, 120
    %v1449 = vpop.permute.xlu0 %1448
    %1450 = vrot.lane.b32.xlu0 %v1383, 120
    %v1451 = vpop.permute.xlu0 %1450
    %vm1484 = vcmask 7168
    %v1485 = vsel %vm1484, %v1284, %v1377
    %v1486 = vsel %vm1484, %v1285, %v1379
    %v1487 = vsel %vm1484, %v1286, %v1381
    %v1488 = vsel %vm1484, %v1287, %v1383
    %v1489 = vsel %vm1484, %v1293, %v1389
    %v1490 = vsel %vm1484, %v1295, %v1391
    %v1491 = vsel %vm1484, %v1297, %v1393
    %v1492 = vsel %vm1484, %v1299, %v1395
    %v1493 = vsel %vm1484, %v1305, %v1397
    %v1494 = vsel %vm1484, %v1307, %v1399
    %v1495 = vsel %vm1484, %v1309, %v1401
    %v1496 = vsel %vm1484, %v1311, %v1403
    %v1497 = vsel %vm1484, %v1317, %v1405
    %v1498 = vsel %vm1484, %v1319, %v1407
    %v1499 = vsel %vm1484, %v1321, %v1409
    %v1500 = vsel %vm1484, %v1323, %v1411
    %v1501 = vsel %vm1484, %v1329, %v1413
    %v1502 = vsel %vm1484, %v1331, %v1415
    %v1503 = vsel %vm1484, %v1333, %v1417
    %v1504 = vsel %vm1484, %v1335, %v1419
    %v1505 = vsel %vm1484, %v1341, %v1421
    %v1506 = vsel %vm1484, %v1343, %v1423
    %v1507 = vsel %vm1484, %v1345, %v1425
    %v1508 = vsel %vm1484, %v1347, %v1427
    %v1509 = vsel %vm1484, %v1353, %v1429
    %v1510 = vsel %vm1484, %v1355, %v1431
    %v1511 = vsel %vm1484, %v1357, %v1433
    %v1512 = vsel %vm1484, %v1359, %v1435
    %v1513 = vsel %vm1484, %v1365, %v1437
    %v1514 = vsel %vm1484, %v1367, %v1439
    %v1515 = vsel %vm1484, %v1369, %v1441
    %v1516 = vsel %vm1484, %v1371, %v1443
    %v1517 = vsel %vm1484, %v1377, %v1445
    %v1518 = vsel %vm1484, %v1379, %v1447
    %v1519 = vsel %vm1484, %v1381, %v1449
    %v1520 = vsel %vm1484, %v1383, %v1451
    %v1521 = vld [vmem:[%s11] sm:$0xff]
    %v1522 = vld [vmem:[%s11 + $0x8] sm:$0xff]
    %v1523 = vld [vmem:[%s11 + $0x10] sm:$0xff]
    %v1524 = vld [vmem:[%s11 + $0x18] sm:$0xff]
    %v1525 = vld [vmem:[%s11 + $0x20] sm:$0xff]
    %v1526 = vld [vmem:[%s11 + $0x28] sm:$0xff]
    %v1527 = vld [vmem:[%s11 + $0x30] sm:$0xff]
    %v1528 = vld [vmem:[%s11 + $0x38] sm:$0xff]
    %v1529 = vld [vmem:[%s11 + $0x40] sm:$0xff]
    %v1530 = vld [vmem:[%s11 + $0x48] sm:$0xff]
    %v1531 = vld [vmem:[%s11 + $0x50] sm:$0xff]
    %v1532 = vld [vmem:[%s11 + $0x58] sm:$0xff]
    %v1533 = vld [vmem:[%s11 + $0x60] sm:$0xff]
    %v1534 = vld [vmem:[%s11 + $0x68] sm:$0xff]
    %v1535 = vld [vmem:[%s11 + $0x70] sm:$0xff]
    %v1536 = vld [vmem:[%s11 + $0x78] sm:$0xff]
    %v1537 = vld [vmem:[%s11 + $0x80] sm:$0xff]
    %v1538 = vld [vmem:[%s11 + $0x88] sm:$0xff]
    %v1539 = vld [vmem:[%s11 + $0x90] sm:$0xff]
    %v1540 = vld [vmem:[%s11 + $0x98] sm:$0xff]
    %v1541 = vld [vmem:[%s11 + $0xa0] sm:$0xff]
    %v1542 = vld [vmem:[%s11 + $0xa8] sm:$0xff]
    %v1543 = vld [vmem:[%s11 + $0xb0] sm:$0xff]
    %v1544 = vld [vmem:[%s11 + $0xb8] sm:$0xff]
    %v1545 = vld [vmem:[%s11 + $0xc0] sm:$0xff]
    %v1546 = vld [vmem:[%s11 + $0xc8] sm:$0xff]
    %v1547 = vld [vmem:[%s11 + $0xd0] sm:$0xff]
    %v1548 = vld [vmem:[%s11 + $0xd8] sm:$0xff]
    %v1549 = vld [vmem:[%s11 + $0xe0] sm:$0xff]
    %v1550 = vld [vmem:[%s11 + $0xe8] sm:$0xff]
    %v1551 = vld [vmem:[%s11 + $0xf0] sm:$0xff]
    %v1552 = vld [vmem:[%s11 + $0xf8] sm:$0xff]
    %v1553 = vld [vmem:[%s11 + $0x100] sm:$0xff]
    %v1554 = vld [vmem:[%s11 + $0x108] sm:$0xff]
    %v1555 = vld [vmem:[%s11 + $0x110] sm:$0xff]
    %v1556 = vld [vmem:[%s11 + $0x118] sm:$0xff]
    %v1557 = vld [vmem:[%s11 + $0x120] sm:$0xff]
    %v1558 = vld [vmem:[%s11 + $0x128] sm:$0xff]
    %v1559 = vld [vmem:[%s11 + $0x130] sm:$0xff]
    %v1560 = vld [vmem:[%s11 + $0x138] sm:$0xff]
    %v1561 = vld [vmem:[%s11 + $0x140] sm:$0xff]
    %v1562 = vld [vmem:[%s11 + $0x148] sm:$0xff]
    %v1563 = vld [vmem:[%s11 + $0x150] sm:$0xff]
    %v1564 = vld [vmem:[%s11 + $0x158] sm:$0xff]
    %v1565 = vld [vmem:[%s11 + $0x160] sm:$0xff]
    %v1566 = vld [vmem:[%s11 + $0x168] sm:$0xff]
    %v1567 = vld [vmem:[%s11 + $0x170] sm:$0xff]
    %v1568 = vld [vmem:[%s11 + $0x178] sm:$0xff]
    %v1569 = vld [vmem:[%s12] sm:$0xff]
    %v1570 = vld [vmem:[%s12 + $0x8] sm:$0xff]
    %v1571 = vld [vmem:[%s12 + $0x10] sm:$0xff]
    %v1572 = vld [vmem:[%s12 + $0x18] sm:$0xff]
    %v1573 = vld [vmem:[%s12 + $0x20] sm:$0xff]
    %v1574 = vld [vmem:[%s12 + $0x28] sm:$0xff]
    %v1575 = vld [vmem:[%s12 + $0x30] sm:$0xff]
    %v1576 = vld [vmem:[%s12 + $0x38] sm:$0xff]
    %v1577 = vld [vmem:[%s12 + $0x40] sm:$0xff]
    %v1578 = vld [vmem:[%s12 + $0x48] sm:$0xff]
    %v1579 = vld [vmem:[%s12 + $0x50] sm:$0xff]
    %v1580 = vld [vmem:[%s12 + $0x58] sm:$0xff]
    %v1581 = vld [vmem:[%s12 + $0x60] sm:$0xff]
    %v1582 = vld [vmem:[%s12 + $0x68] sm:$0xff]
    %v1583 = vld [vmem:[%s12 + $0x70] sm:$0xff]
    %v1584 = vld [vmem:[%s12 + $0x78] sm:$0xff]
    %1586 = vset.pattern.permute.xlu0 0
    %1587 = vperm.xlu0 %1586, %v1569
    %v1588 = vpop.permute.xlu0 %1587
    %1591 = vset.pattern.permute.xlu0 0
    %1592 = vperm.xlu0 %1591, %v1570
    %v1593 = vpop.permute.xlu0 %1592
    %1596 = vset.pattern.permute.xlu0 0
    %1597 = vperm.xlu0 %1596, %v1571
    %v1598 = vpop.permute.xlu0 %1597
    %1601 = vset.pattern.permute.xlu0 0
    %1602 = vperm.xlu0 %1601, %v1572
    %v1603 = vpop.permute.xlu0 %1602
    %1606 = vset.pattern.permute.xlu0 0
    %1607 = vperm.xlu0 %1606, %v1573
    %v1608 = vpop.permute.xlu0 %1607
    %1611 = vset.pattern.permute.xlu0 0
    %1612 = vperm.xlu0 %1611, %v1574
    %v1613 = vpop.permute.xlu0 %1612
    %1616 = vset.pattern.permute.xlu0 0
    %1617 = vperm.xlu0 %1616, %v1575
    %v1618 = vpop.permute.xlu0 %1617
    %1621 = vset.pattern.permute.xlu0 0
    %1622 = vperm.xlu0 %1621, %v1576
    %v1623 = vpop.permute.xlu0 %1622
    %1626 = vset.pattern.permute.xlu0 0
    %1627 = vperm.xlu0 %1626, %v1577
    %v1628 = vpop.permute.xlu0 %1627
    %1631 = vset.pattern.permute.xlu0 0
    %1632 = vperm.xlu0 %1631, %v1578
    %v1633 = vpop.permute.xlu0 %1632
    %1636 = vset.pattern.permute.xlu0 0
    %1637 = vperm.xlu0 %1636, %v1579
    %v1638 = vpop.permute.xlu0 %1637
    %1641 = vset.pattern.permute.xlu0 0
    %1642 = vperm.xlu0 %1641, %v1580
    %v1643 = vpop.permute.xlu0 %1642
    %1646 = vset.pattern.permute.xlu0 0
    %1647 = vperm.xlu0 %1646, %v1581
    %v1648 = vpop.permute.xlu0 %1647
    %1651 = vset.pattern.permute.xlu0 0
    %1652 = vperm.xlu0 %1651, %v1582
    %v1653 = vpop.permute.xlu0 %1652
    %1656 = vset.pattern.permute.xlu0 0
    %1657 = vperm.xlu0 %1656, %v1583
    %v1658 = vpop.permute.xlu0 %1657
    %1661 = vset.pattern.permute.xlu0 0
    %1662 = vperm.xlu0 %1661, %v1584
    %v1663 = vpop.permute.xlu0 %1662
    %vm1665 = vcmask 261120
    %v1667 = vsel %vm1665, %v1523, 0
    %v1670 = vsel %vm1665, %v1526, 0
    %v1673 = vsel %vm1665, %v1529, 0
    %v1676 = vsel %vm1665, %v1532, 0
    %v1679 = vsel %vm1665, %v1535, 0
    %v1682 = vsel %vm1665, %v1538, 0
    %v1685 = vsel %vm1665, %v1541, 0
    %v1688 = vsel %vm1665, %v1544, 0
    %v1691 = vsel %vm1665, %v1547, 0
    %v1694 = vsel %vm1665, %v1550, 0
    %v1697 = vsel %vm1665, %v1553, 0
    %v1700 = vsel %vm1665, %v1556, 0
    %v1703 = vsel %vm1665, %v1559, 0
    %v1706 = vsel %vm1665, %v1562, 0
    %v1709 = vsel %vm1665, %v1565, 0
    %v1712 = vsel %vm1665, %v1568, 0
    %1714 = vmatpush.msra.mxu0 %v1500
    %1715 = vmatpush.msra.mxu0 %v1499
    %1716 = vmatpush.msra.mxu0 %v1498
    %1717 = vmatpush.msra.mxu0 %v1497
    %1718 = vmatpush.msra.mxu0 %v1496
    %1719 = vmatpush.msra.mxu0 %v1495
    %1720 = vmatpush.msra.mxu0 %v1494
    %1721 = vmatpush.msra.mxu0 %v1493
    %1722 = vmatpush.msra.mxu0 %v1492
    %1723 = vmatpush.msra.mxu0 %v1491
    %1724 = vmatpush.msra.mxu0 %v1490
    %1725 = vmatpush.msra.mxu0 %v1489
    %1726 = vmatpush.msra.mxu0 %v1488
    %1727 = vmatpush.msra.mxu0 %v1487
    %1728 = vmatpush.msra.mxu0 %v1486
    %1729 = vmatpush.msra.mxu0 %v1485
    %1730 = vmatmul.f32.gmra.mxu0 %v1521
    %v1731 = vpop.f32.mrf.mxu0
    %v1732 = vadd.f32 %v1588, %v1731
    %1733 = vmatmul.f32.gmra.mxu0 %v1524
    %v1734 = vpop.f32.mrf.mxu0
    %v1735 = vadd.f32 %v1593, %v1734
    %1736 = vmatmul.f32.gmra.mxu0 %v1527
    %v1737 = vpop.f32.mrf.mxu0
    %v1738 = vadd.f32 %v1598, %v1737
    %1739 = vmatmul.f32.gmra.mxu0 %v1530
    %v1740 = vpop.f32.mrf.mxu0
    %v1741 = vadd.f32 %v1603, %v1740
    %1742 = vmatmul.f32.gmra.mxu0 %v1533
    %v1743 = vpop.f32.mrf.mxu0
    %v1744 = vadd.f32 %v1608, %v1743
    %1745 = vmatmul.f32.gmra.mxu0 %v1536
    %v1746 = vpop.f32.mrf.mxu0
    %v1747 = vadd.f32 %v1613, %v1746
    %1748 = vmatmul.f32.gmra.mxu0 %v1539
    %v1749 = vpop.f32.mrf.mxu0
    %v1750 = vadd.f32 %v1618, %v1749
    %1751 = vmatmul.f32.gmra.mxu0 %v1542
    %v1752 = vpop.f32.mrf.mxu0
    %v1753 = vadd.f32 %v1623, %v1752
    %1754 = vmatmul.f32.gmra.mxu0 %v1545
    %v1755 = vpop.f32.mrf.mxu0
    %v1756 = vadd.f32 %v1628, %v1755
    %1757 = vmatmul.f32.gmra.mxu0 %v1548
    %v1758 = vpop.f32.mrf.mxu0
    %v1759 = vadd.f32 %v1633, %v1758
    %1760 = vmatmul.f32.gmra.mxu0 %v1551
    %v1761 = vpop.f32.mrf.mxu0
    %v1762 = vadd.f32 %v1638, %v1761
    %1763 = vmatmul.f32.gmra.mxu0 %v1554
    %v1764 = vpop.f32.mrf.mxu0
    %v1765 = vadd.f32 %v1643, %v1764
    %1766 = vmatmul.f32.gmra.mxu0 %v1557
    %v1767 = vpop.f32.mrf.mxu0
    %v1768 = vadd.f32 %v1648, %v1767
    %1769 = vmatmul.f32.gmra.mxu0 %v1560
    %v1770 = vpop.f32.mrf.mxu0
    %v1771 = vadd.f32 %v1653, %v1770
    %1772 = vmatmul.f32.gmra.mxu0 %v1563
    %v1773 = vpop.f32.mrf.mxu0
    %v1774 = vadd.f32 %v1658, %v1773
    %1775 = vmatmul.f32.gmra.mxu0 %v1566
    %v1776 = vpop.f32.mrf.mxu0
    %v1777 = vadd.f32 %v1663, %v1776
    %1778 = vdwg.mxu0
    %1779 = vmatpush.msra.mxu0 %v1516
    %1780 = vmatpush.msra.mxu0 %v1515
    %1781 = vmatpush.msra.mxu0 %v1514
    %1782 = vmatpush.msra.mxu0 %v1513
    %1783 = vmatpush.msra.mxu0 %v1512
    %1784 = vmatpush.msra.mxu0 %v1511
    %1785 = vmatpush.msra.mxu0 %v1510
    %1786 = vmatpush.msra.mxu0 %v1509
    %1787 = vmatpush.msra.mxu0 %v1508
    %1788 = vmatpush.msra.mxu0 %v1507
    %1789 = vmatpush.msra.mxu0 %v1506
    %1790 = vmatpush.msra.mxu0 %v1505
    %1791 = vmatpush.msra.mxu0 %v1504
    %1792 = vmatpush.msra.mxu0 %v1503
    %1793 = vmatpush.msra.mxu0 %v1502
    %1794 = vmatpush.msra.mxu0 %v1501
    %1795 = vmatmul.f32.gmra.mxu0 %v1522
    %v1796 = vpop.f32.mrf.mxu0
    %v1797 = vadd.f32 %v1732, %v1796
    %1798 = vmatmul.f32.gmra.mxu0 %v1525
    %v1799 = vpop.f32.mrf.mxu0
    %v1800 = vadd.f32 %v1735, %v1799
    %1801 = vmatmul.f32.gmra.mxu0 %v1528
    %v1802 = vpop.f32.mrf.mxu0
    %v1803 = vadd.f32 %v1738, %v1802
    %1804 = vmatmul.f32.gmra.mxu0 %v1531
    %v1805 = vpop.f32.mrf.mxu0
    %v1806 = vadd.f32 %v1741, %v1805
    %1807 = vmatmul.f32.gmra.mxu0 %v1534
    %v1808 = vpop.f32.mrf.mxu0
    %v1809 = vadd.f32 %v1744, %v1808
    %1810 = vmatmul.f32.gmra.mxu0 %v1537
    %v1811 = vpop.f32.mrf.mxu0
    %v1812 = vadd.f32 %v1747, %v1811
    %1813 = vmatmul.f32.gmra.mxu0 %v1540
    %v1814 = vpop.f32.mrf.mxu0
    %v1815 = vadd.f32 %v1750, %v1814
    %1816 = vmatmul.f32.gmra.mxu0 %v1543
    %v1817 = vpop.f32.mrf.mxu0
    %v1818 = vadd.f32 %v1753, %v1817
    %1819 = vmatmul.f32.gmra.mxu0 %v1546
    %v1820 = vpop.f32.mrf.mxu0
    %v1821 = vadd.f32 %v1756, %v1820
    %1822 = vmatmul.f32.gmra.mxu0 %v1549
    %v1823 = vpop.f32.mrf.mxu0
    %v1824 = vadd.f32 %v1759, %v1823
    %1825 = vmatmul.f32.gmra.mxu0 %v1552
    %v1826 = vpop.f32.mrf.mxu0
    %v1827 = vadd.f32 %v1762, %v1826
    %1828 = vmatmul.f32.gmra.mxu0 %v1555
    %v1829 = vpop.f32.mrf.mxu0
    %v1830 = vadd.f32 %v1765, %v1829
    %1831 = vmatmul.f32.gmra.mxu0 %v1558
    %v1832 = vpop.f32.mrf.mxu0
    %v1833 = vadd.f32 %v1768, %v1832
    %1834 = vmatmul.f32.gmra.mxu0 %v1561
    %v1835 = vpop.f32.mrf.mxu0
    %v1836 = vadd.f32 %v1771, %v1835
    %1837 = vmatmul.f32.gmra.mxu0 %v1564
    %v1838 = vpop.f32.mrf.mxu0
    %v1839 = vadd.f32 %v1774, %v1838
    %1840 = vmatmul.f32.gmra.mxu0 %v1567
    %v1841 = vpop.f32.mrf.mxu0
    %v1842 = vadd.f32 %v1777, %v1841
    %1843 = vdwg.mxu0
    %1844 = vmatpush.msra.mxu0 0.0
    %1845 = vmatpush.msra.mxu0 0.0
    %1846 = vmatpush.msra.mxu0 0.0
    %1847 = vmatpush.msra.mxu0 0.0
    %1848 = vmatpush.msra.mxu0 0.0
    %1849 = vmatpush.msra.mxu0 0.0
    %1850 = vmatpush.msra.mxu0 0.0
    %1851 = vmatpush.msra.mxu0 0.0
    %1852 = vmatpush.msra.mxu0 0.0
    %1853 = vmatpush.msra.mxu0 0.0
    %1854 = vmatpush.msra.mxu0 0.0
    %1855 = vmatpush.msra.mxu0 0.0
    %1856 = vmatpush.msra.mxu0 %v1520
    %1857 = vmatpush.msra.mxu0 %v1519
    %1858 = vmatpush.msra.mxu0 %v1518
    %1859 = vmatpush.msra.mxu0 %v1517
    %1860 = vmatmul.f32.gmra.mxu0 %v1667
    %v1861 = vpop.f32.mrf.mxu0
    %v1862 = vadd.f32 %v1797, %v1861
    %1863 = vmatmul.f32.gmra.mxu0 %v1670
    %v1864 = vpop.f32.mrf.mxu0
    %v1865 = vadd.f32 %v1800, %v1864
    %1866 = vmatmul.f32.gmra.mxu0 %v1673
    %v1867 = vpop.f32.mrf.mxu0
    %v1868 = vadd.f32 %v1803, %v1867
    %1869 = vmatmul.f32.gmra.mxu0 %v1676
    %v1870 = vpop.f32.mrf.mxu0
    %v1871 = vadd.f32 %v1806, %v1870
    %1872 = vmatmul.f32.gmra.mxu0 %v1679
    %v1873 = vpop.f32.mrf.mxu0
    %v1874 = vadd.f32 %v1809, %v1873
    %1875 = vmatmul.f32.gmra.mxu0 %v1682
    %v1876 = vpop.f32.mrf.mxu0
    %v1877 = vadd.f32 %v1812, %v1876
    %1878 = vmatmul.f32.gmra.mxu0 %v1685
    %v1879 = vpop.f32.mrf.mxu0
    %v1880 = vadd.f32 %v1815, %v1879
    %1881 = vmatmul.f32.gmra.mxu0 %v1688
    %v1882 = vpop.f32.mrf.mxu0
    %v1883 = vadd.f32 %v1818, %v1882
    %1884 = vmatmul.f32.gmra.mxu0 %v1691
    %v1885 = vpop.f32.mrf.mxu0
    %v1886 = vadd.f32 %v1821, %v1885
    %1887 = vmatmul.f32.gmra.mxu0 %v1694
    %v1888 = vpop.f32.mrf.mxu0
    %v1889 = vadd.f32 %v1824, %v1888
    %1890 = vmatmul.f32.gmra.mxu0 %v1697
    %v1891 = vpop.f32.mrf.mxu0
    %v1892 = vadd.f32 %v1827, %v1891
    %1893 = vmatmul.f32.gmra.mxu0 %v1700
    %v1894 = vpop.f32.mrf.mxu0
    %v1895 = vadd.f32 %v1830, %v1894
    %1896 = vmatmul.f32.gmra.mxu0 %v1703
    %v1897 = vpop.f32.mrf.mxu0
    %v1898 = vadd.f32 %v1833, %v1897
    %1899 = vmatmul.f32.gmra.mxu0 %v1706
    %v1900 = vpop.f32.mrf.mxu0
    %v1901 = vadd.f32 %v1836, %v1900
    %1902 = vmatmul.f32.gmra.mxu0 %v1709
    %v1903 = vpop.f32.mrf.mxu0
    %v1904 = vadd.f32 %v1839, %v1903
    %1905 = vmatmul.f32.gmra.mxu0 %v1712
    %v1906 = vpop.f32.mrf.mxu0
    %v1907 = vadd.f32 %v1842, %v1906
    %1908 = vdwg.mxu0
    %v1909 = vmax.f32 %v1862, 0.0
    %v1910 = vmax.f32 %v1865, 0.0
    %v1911 = vmax.f32 %v1868, 0.0
    %v1912 = vmax.f32 %v1871, 0.0
    %v1913 = vmax.f32 %v1874, 0.0
    %v1914 = vmax.f32 %v1877, 0.0
    %v1915 = vmax.f32 %v1880, 0.0
    %v1916 = vmax.f32 %v1883, 0.0
    %v1917 = vmax.f32 %v1886, 0.0
    %v1918 = vmax.f32 %v1889, 0.0
    %v1919 = vmax.f32 %v1892, 0.0
    %v1920 = vmax.f32 %v1895, 0.0
    %v1921 = vmax.f32 %v1898, 0.0
    %v1922 = vmax.f32 %v1901, 0.0
    %v1923 = vmax.f32 %v1904, 0.0
    %v1924 = vmax.f32 %v1907, 0.0
    %v1925 = vld [vmem:[%s13] sm:$0xff]
    %v1926 = vld [vmem:[%s14] sm:$0xff]
    %1928 = vset.pattern.permute.xlu0 0
    %1929 = vperm.xlu0 %1928, %v1926
    %v1930 = vpop.permute.xlu0 %1929
    %1932 = vmatpush.msra.mxu0 %v1924
    %1933 = vmatpush.msra.mxu0 %v1923
    %1934 = vmatpush.msra.mxu0 %v1922
    %1935 = vmatpush.msra.mxu0 %v1921
    %1936 = vmatpush.msra.mxu0 %v1920
    %1937 = vmatpush.msra.mxu0 %v1919
    %1938 = vmatpush.msra.mxu0 %v1918
    %1939 = vmatpush.msra.mxu0 %v1917
    %1940 = vmatpush.msra.mxu0 %v1916
    %1941 = vmatpush.msra.mxu0 %v1915
    %1942 = vmatpush.msra.mxu0 %v1914
    %1943 = vmatpush.msra.mxu0 %v1913
    %1944 = vmatpush.msra.mxu0 %v1912
    %1945 = vmatpush.msra.mxu0 %v1911
    %1946 = vmatpush.msra.mxu0 %v1910
    %1947 = vmatpush.msra.mxu0 %v1909
    %1948 = vmatmul.f32.gmra.mxu0 %v1925
    %v1949 = vpop.f32.mrf.mxu0
    %v1950 = vadd.f32 %v1930, %v1949
    %1951 = vdwg.mxu0
    %v1952 = vmul.f32 %v1950, 1.442695
    %v1953 = vpow.pop %v1952
    %v1954 = vld [vmem:[%s15] sm:$0xf]
    %v1956 = vrot.slane %v1954, 4
    %v1958 = vmul.f32 %v1953, %v1956
    %v1960 = vrot.slane %v1958, 4
    %v1962 = vadd.f32 %v1950, %v1960
    %vm1963 = vcmask 11264
    %1964 = vst.msk [vmem:[%s16] sm:$0xf] %vm1963, %v1962
    %v1965 = vmul.f32 %v1953, %v1953
    %v1966 = vmul.f32 %v1950, %v1950
    %v1968 = vrot.slane %v1966, 4
    %v1970 = vadd.f32 %v1965, %v1968
    %v1971 = vsub.f32 %v1970, %v1950
    %v1972 = vsub.f32 %v1971, 0.5
    %v1974 = vrot.slane %v1972, 4
    %v1976 = vsel %vm1963, %v1974, 0.0
    %1977 = vadd.xlane.f32.xlu0 %v1976
    %v1978 = vpop.xlane.xlu0 %1977
    %v1979 = vrot.slane %v1978, 4
    %v1980 = vadd.f32 %v1978, %v1979
    %v1981 = vrot.slane %v1980, 2
    %v1982 = vadd.f32 %v1980, %v1981
    %v1983 = vrot.slane %v1982, 1
    %v1984 = vadd.f32 %v1982, %v1983
    %s1985 = vtos %v1984
    %v1986 = vstv %s1985
    %vm1987 = vcmask 0
    %1988 = vst.msk [vmem:[#allocation2] sm:$0x1] %vm1987, %v1986
    // Predicated region
    $region66: #{conv_encoder_forward.1} parent=1 // pred_check
      _
    $region67: #{conv_encoder_forward.1} parent=1 // pred_check_branch
      %1990 = sbr.rel (0) target = $region69
    $region68: #{conv_encoder_forward.1} parent=1 // pred_region
      _
    $region69: #{conv_encoder_forward.1} parent=1 // pred_fallthru
      _
    // Predicated region
    $region70: #{conv_encoder_forward.1} parent=1 // pred_check
      _
    $region71: #{conv_encoder_forward.1} parent=1 // pred_check_branch
      %1992 = sbr.rel (0) target = $region73
    $region72: #{conv_encoder_forward.1} parent=1 // pred_region
      %1994 = vsyncadd [#allocation3], 0
      %s1996 = sshll.u32 [#allocation2], 4
      %s1997 = int_to_ptr.vmem [resolvable:$true] %s1996
      %s1998 = sshll.u32 %s17, 4
      %s1999 = int_to_ptr.hbm [resolvable:$true] %s1998
      %2001 = dma.vmem_to_hbm [thread:$0]  %s1997, 16, %s1999, [#allocation3]
    $region73: #{conv_encoder_forward.1} parent=1 // pred_fallthru
      _
    // Predicated region
    $region74: #{conv_encoder_forward.1} parent=1 // pred_check
      _
    $region75: #{conv_encoder_forward.1} parent=1 // pred_check_branch
      %2003 = sbr.rel (0) target = $region77
    $region76: #{conv_encoder_forward.1} parent=1 // pred_region
      _
    $region77: #{conv_encoder_forward.1} parent=1 // pred_fallthru
      _
    // Predicated region
    $region78: #{conv_encoder_forward.1} parent=1 // pred_check
      _
    $region79: #{conv_encoder_forward.1} parent=1 // pred_check_branch
      %2005 = sbr.rel (0) target = $region81
    $region80: #{conv_encoder_forward.1} parent=1 // pred_region
      %2007 = dma.done [#allocation3], 16
    $region81: #{conv_encoder_forward.1} parent=1 // pred_fallthru
      _
    %2008 = vsyncpa [#allocation3], 1

</llo_original>
